<compile_context>
chip_gen: v7x
topology: tpu7x:2x2x1
jax: 0.10.0
libtpu: 0.0.40
codegen_flags: <defaults>
</compile_context>

<pallas_src>
import jax
import jax.numpy as jnp
from jax.experimental import pallas as pl
from jax.experimental.pallas import tpu as pltpu


_VMEM_CAP_BYTES = 48 * 1024 * 1024  # safe on v7x (64 MiB/TC), < v5e/v6e 128 MiB


def _residual_ff_kernel(x_ref, w1_ref, b1_ref, w2_ref, b2_ref, o_ref, acc_ref):
    """One (TM, D) row tile of  o = GELU(x @ W1 + b1) @ W2 + b2 + x.

    Grid is (M tiles, H slabs).  The H axis streams (D, tH)/(tH, D) weight
    slabs and accumulates the second matmul in f32 VMEM scratch; with a
    single H slab (weights fully resident) it degenerates to one pass.
    """
    h_idx = pl.program_id(1)

    @pl.when(h_idx == 0)
    def _():
        acc_ref[...] = jnp.zeros_like(acc_ref)

    x = x_ref[...]                                          # (TM, D) f32
    # MXU pass 1: bf16 x bf16 -> f32 accumulate.
    h = jnp.dot(x.astype(jnp.bfloat16), w1_ref[...],
                preferred_element_type=jnp.float32)         # (TM, tH) f32
    h = jax.nn.gelu(h + b1_ref[...])                        # bias + GELU, f32
    # MXU pass 2 (partial over H): bf16 x bf16 -> f32 accumulate.
    acc_ref[...] += jnp.dot(h.astype(jnp.bfloat16), w2_ref[...],
                            preferred_element_type=jnp.float32)  # (TM, D)

    @pl.when(h_idx == pl.num_programs(1) - 1)
    def _():
        # bias + residual add in f32, single lane-dense store.
        o_ref[...] = (acc_ref[...] + b2_ref[...]
                      + x.astype(jnp.float32)).astype(o_ref.dtype)


def _choose_row_tile(M, tm_target):
    """Row tile: multiple of 8 (f32 sublane), prefer an exact divisor of M
    (no pad/slice HBM copies), and keep >= 2 blocks so v7x megacore sharding
    of the parallel axis has work for both TensorCores."""
    tm_target = max(8, (tm_target // 8) * 8)
    cap = M if M < 16 else M // 2          # >= 2 blocks when M allows it
    cap = max(8, (cap // 8) * 8)
    tm = min(tm_target, cap)
    for cand in range(tm, 7, -8):          # largest divisor of M <= tm
        if M % cand == 0:
            return cand
    return tm                              # no divisor: caller pads the tail


def _choose_h_tile(D, H, weight_budget_bytes):
    """H slab width for streaming W1[:, tH] / W2[tH, :] (bf16).

    Returns H (fully resident, single-buffered) when both weights fit the
    budget; otherwise the largest multiple of 128 dividing H whose
    double-buffered slabs fit."""
    resident = 2 * D * H * 2               # W1 + W2, bf16, one copy
    if resident <= weight_budget_bytes or H % 128 != 0:
        # TODO(synk): H not a multiple of 128 and too big to be resident
        # would need a masked/ragged H slab; not needed at Perceiver dims.
        return H
    best = None
    th = 128
    while th < H:
        if H % th == 0 and 2 * (2 * D * th * 2) <= weight_budget_bytes:
            best = th
        th += 128
    return best if best is not None else 128


def residual_feedforward(x, w1, b1, w2, b2, *, tm=512):
    """Residual(FeedForward)(x) with x of shape (B, S, D).

    w1: (D, H) bf16, b1: (1, H) f32, w2: (H, D) bf16, b2: (1, D) f32.
    """
    B, S, D = x.shape
    Dw, H = w1.shape
    assert Dw == D and w2.shape == (H, D)
    assert b1.shape == (1, H) and b2.shape == (1, D)
    M = B * S
    x2 = x.reshape(M, D)

    tm = _choose_row_tile(M, tm)
    assert tm % 8 == 0, "row tile must be a multiple of the f32 sublane (8)"

    n_m = pl.cdiv(M, tm)
    Mp = n_m * tm
    padded = Mp != M
    if padded:
        # TODO(synk): handle the ragged tail with a masked store inside the
        # kernel instead of a host-side pad + slice (extra HBM traffic).
        x2 = jnp.pad(x2, ((0, Mp - M), (0, 0)))

    # VMEM budget: double-buffered activation tiles + f32 accumulator; the
    # remainder goes to weights.  Stream H slabs when weights do not fit.
    act_bytes = 2 * tm * D * x2.dtype.itemsize          # x tiles, 2 buffers
    act_bytes += 2 * tm * D * x.dtype.itemsize          # out tiles, 2 buffers
    acc_bytes = tm * D * 4                               # f32 accumulator
    weight_budget = max(
        _VMEM_CAP_BYTES - act_bytes - acc_bytes - (8 << 20), 4 << 20)
    th = _choose_h_tile(D, H, weight_budget)
    assert H % th == 0
    n_h = H // th

    # Single-buffer invariant (constant index map) operands; default
    # double-buffering when weight slabs are streamed along the H axis.
    const_pipe = pl.Buffered(1) if n_h == 1 else None

    nbuf_w = 1 if n_h == 1 else 2
    need = (act_bytes + acc_bytes
            + nbuf_w * (2 * D * th * 2 + th * 4)         # W1+W2 slabs + b1
            + D * 4)                                      # b2
    vmem_limit = int(min(_VMEM_CAP_BYTES,
                         max(2 * need + (4 << 20), 16 << 20)))

    out = pl.pallas_call(
        _residual_ff_kernel,
        out_shape=jax.ShapeDtypeStruct((Mp, D), x.dtype),
        grid_spec=pltpu.PrefetchScalarGridSpec(
            num_scalar_prefetch=0,
            grid=(n_m, n_h),
            in_specs=[
                pl.BlockSpec((tm, D), lambda i, h: (i, 0)),        # x tile
                pl.BlockSpec((D, th), lambda i, h: (0, h),
                             pipeline_mode=const_pipe),             # W1 slab
                pl.BlockSpec((1, th), lambda i, h: (0, h),
                             pipeline_mode=const_pipe),             # b1 slab
                pl.BlockSpec((th, D), lambda i, h: (h, 0),
                             pipeline_mode=const_pipe),             # W2 slab
                pl.BlockSpec((1, D), lambda i, h: (0, 0),
                             pipeline_mode=pl.Buffered(1)),         # b2
            ],
            out_specs=pl.BlockSpec((tm, D), lambda i, h: (i, 0)),
            scratch_shapes=[pltpu.VMEM((tm, D), jnp.float32)],
        ),
        compiler_params=pltpu.CompilerParams(
            dimension_semantics=("parallel", "arbitrary"),
            vmem_limit_bytes=vmem_limit,
        ),
    )(x2, w1, b1, w2, b2)

    if padded:
        out = out[:M]
    return out.reshape(B, S, D)


def reference(x, w1, b1, w2, b2):
    """Pure-JAX reference with the same precision policy (bf16 matmul, f32 acc)."""
    h = jnp.dot(x.astype(jnp.bfloat16), w1,
                preferred_element_type=jnp.float32) + b1
    h = jax.nn.gelu(h)
    y = jnp.dot(h.astype(jnp.bfloat16), w2,
                preferred_element_type=jnp.float32) + b2
    return (y + x.astype(jnp.float32)).astype(x.dtype)


if __name__ == "__main__":
    # Small but lane-dense shapes consistent with Perceiver usage of Residual:
    # model dim D a multiple of 128 so stores are unmasked full-lane vst.
    # (Don't tune MXU behavior at D=128; benchmark at production D >= 256.)
    B, S, D = 2, 128, 128      # batch, seq, model dim -> M = 256 rows
    H = 4 * D                  # feedforward hidden (mult = 4) = 512

    key = jax.random.PRNGKey(0)
    kx, k1, k2, k3, k4 = jax.random.split(key, 5)

    x = jax.random.normal(kx, (B, S, D), dtype=jnp.float32)
    # Deterministic synthetic parameters; weights kept in bf16 for the MXU.
    w1 = (jax.random.normal(k1, (D, H), dtype=jnp.float32)
          * (1.0 / jnp.sqrt(D))).astype(jnp.bfloat16)
    b1 = jax.random.normal(k2, (1, H), dtype=jnp.float32) * 0.01
    w2 = (jax.random.normal(k3, (H, D), dtype=jnp.float32)
          * (1.0 / jnp.sqrt(H))).astype(jnp.bfloat16)
    b2 = jax.random.normal(k4, (1, D), dtype=jnp.float32) * 0.01

    out = residual_feedforward(x, w1, b1, w2, b2)
    out = jax.block_until_ready(out)

    ref = reference(x, w1, b1, w2, b2)
    assert out.shape == (B, S, D)
    assert jnp.allclose(out, ref, atol=2e-3, rtol=2e-3), "mismatch vs reference"

    print("KERNEL_OK")
</pallas_src>

<mosaic_0001>
module attributes {stable_mosaic.version = 11 : i64} {
  func.func @_residual_ff_kernel(%arg0: i32, %arg1: i32, %arg2: memref<128x128xf32, #tpu.memory_space<vmem>>, %arg3: memref<128x512xbf16, #tpu.memory_space<vmem>>, %arg4: memref<1x512xf32, #tpu.memory_space<vmem>>, %arg5: memref<512x128xbf16, #tpu.memory_space<vmem>>, %arg6: memref<1x128xf32, #tpu.memory_space<vmem>>, %arg7: memref<128x128xf32, #tpu.memory_space<vmem>>, %arg8: memref<128x128xf32, #tpu.memory_space<vmem>>) attributes {dimension_semantics = [#tpu.dimension_semantics<parallel>, #tpu.dimension_semantics<arbitrary>], iteration_bounds = array<i64: 2, 1>, scalar_prefetch = 0 : i64, scratch_operands = 1 : i64, tpu.core_type = #tpu.core_type<tc>, window_params = [{transform_indices = @transform_0, window_bounds = array<i64: 128, 128>}, {pipeline_mode = #tpu.pipeline_mode<synchronous>, transform_indices = @transform_1, window_bounds = array<i64: 128, 512>}, {pipeline_mode = #tpu.pipeline_mode<synchronous>, transform_indices = @transform_2, window_bounds = array<i64: 1, 512>}, {pipeline_mode = #tpu.pipeline_mode<synchronous>, transform_indices = @transform_3, window_bounds = array<i64: 512, 128>}, {pipeline_mode = #tpu.pipeline_mode<synchronous>, transform_indices = @transform_4, window_bounds = array<i64: 1, 128>}, {transform_indices = @transform_5, window_bounds = array<i64: 128, 128>}]} {
    %c0_i32 = arith.constant 0 : i32
    %0 = arith.cmpi eq, %arg1, %c0_i32 : i32
    %1 = arith.extui %0 : i1 to i32
    %c0_i32_0 = arith.constant 0 : i32
    %2 = arith.cmpi ne, %1, %c0_i32_0 : i32
    scf.if %2 {
      %cst_19 = arith.constant 0.000000e+00 : f32
      %32 = vector.broadcast %cst_19 : f32 to vector<128x128xf32>
      %c0_20 = arith.constant 0 : index
      %c0_21 = arith.constant 0 : index
      %33 = vector.load %arg8[%c0_20, %c0_21] : memref<128x128xf32, #tpu.memory_space<vmem>>, vector<128x128xf32>
      tpu.vector_store %arg8[%c0_20, %c0_21], %32 {strides = array<i32>} : memref<128x128xf32, #tpu.memory_space<vmem>>, vector<128x128xf32>,
    } else {
    }
    %c0 = arith.constant 0 : index
    %c0_1 = arith.constant 0 : index
    %3 = vector.load %arg2[%c0, %c0_1] : memref<128x128xf32, #tpu.memory_space<vmem>>, vector<128x128xf32>
    %4 = arith.truncf %3 : vector<128x128xf32> to vector<128x128xbf16>
    %c0_2 = arith.constant 0 : index
    %c0_3 = arith.constant 0 : index
    %5 = vector.load %arg3[%c0_2, %c0_3] : memref<128x512xbf16, #tpu.memory_space<vmem>>, vector<128x512xbf16>
    %cst = arith.constant dense<0.000000e+00> : vector<128x512xf32>
    %6 = tpu.matmul %4, %5, %cst {dimension_numbers = #tpu.dot_dimension_numbers<[1], [0], [0], [1], [0, 0, 1, 1], [], []>} : vector<128x128xbf16>, vector<128x512xbf16>, vector<128x512xf32> -> vector<128x512xf32>
    %c0_4 = arith.constant 0 : index
    %c0_5 = arith.constant 0 : index
    %7 = vector.load %arg4[%c0_4, %c0_5] : memref<1x512xf32, #tpu.memory_space<vmem>>, vector<1x512xf32>
    %8 = vector.broadcast %7 : vector<1x512xf32> to vector<128x512xf32>
    %9 = arith.addf %6, %8 : vector<128x512xf32>
    %10 = arith.mulf %9, %9 : vector<128x512xf32>
    %11 = arith.mulf %9, %10 : vector<128x512xf32>
    %cst_6 = arith.constant 4.471500e-02 : f32
    %12 = vector.broadcast %cst_6 : f32 to vector<128x512xf32>
    %13 = arith.mulf %12, %11 : vector<128x512xf32>
    %14 = arith.addf %9, %13 : vector<128x512xf32>
    %cst_7 = arith.constant 0.797884583 : f32
    %15 = vector.broadcast %cst_7 : f32 to vector<128x512xf32>
    %16 = arith.mulf %15, %14 : vector<128x512xf32>
    %17 = math.tanh %16 : vector<128x512xf32>
    %cst_8 = arith.constant 1.000000e+00 : f32
    %18 = vector.broadcast %cst_8 : f32 to vector<128x512xf32>
    %19 = arith.addf %18, %17 : vector<128x512xf32>
    %cst_9 = arith.constant 5.000000e-01 : f32
    %20 = vector.broadcast %cst_9 : f32 to vector<128x512xf32>
    %21 = arith.mulf %20, %19 : vector<128x512xf32>
    %22 = arith.mulf %9, %21 : vector<128x512xf32>
    %c0_10 = arith.constant 0 : index
    %c0_11 = arith.constant 0 : index
    %23 = vector.load %arg8[%c0_10, %c0_11] : memref<128x128xf32, #tpu.memory_space<vmem>>, vector<128x128xf32>
    %24 = arith.truncf %22 : vector<128x512xf32> to vector<128x512xbf16>
    %c0_12 = arith.constant 0 : index
    %c0_13 = arith.constant 0 : index
    %25 = vector.load %arg5[%c0_12, %c0_13] : memref<512x128xbf16, #tpu.memory_space<vmem>>, vector<512x128xbf16>
    %cst_14 = arith.constant dense<0.000000e+00> : vector<128x128xf32>
    %26 = tpu.matmul %24, %25, %cst_14 {dimension_numbers = #tpu.dot_dimension_numbers<[1], [0], [0], [1], [0, 0, 1, 1], [], []>} : vector<128x512xbf16>, vector<512x128xbf16>, vector<128x128xf32> -> vector<128x128xf32>
    %27 = arith.addf %23, %26 : vector<128x128xf32>
    %c0_15 = arith.constant 0 : index
    %c0_16 = arith.constant 0 : index
    %28 = vector.load %arg8[%c0_15, %c0_16] : memref<128x128xf32, #tpu.memory_space<vmem>>, vector<128x128xf32>
    tpu.vector_store %arg8[%c0_15, %c0_16], %27 {strides = array<i32>} : memref<128x128xf32, #tpu.memory_space<vmem>>, vector<128x128xf32>,
    %c0_i32_17 = arith.constant 0 : i32
    %29 = arith.cmpi eq, %arg1, %c0_i32_17 : i32
    %30 = arith.extui %29 : i1 to i32
    %c0_i32_18 = arith.constant 0 : i32
    %31 = arith.cmpi ne, %30, %c0_i32_18 : i32
    scf.if %31 {
      %c0_19 = arith.constant 0 : index
      %c0_20 = arith.constant 0 : index
      %32 = vector.load %arg8[%c0_19, %c0_20] : memref<128x128xf32, #tpu.memory_space<vmem>>, vector<128x128xf32>
      %c0_21 = arith.constant 0 : index
      %c0_22 = arith.constant 0 : index
      %33 = vector.load %arg6[%c0_21, %c0_22] : memref<1x128xf32, #tpu.memory_space<vmem>>, vector<1x128xf32>
      %34 = vector.broadcast %33 : vector<1x128xf32> to vector<128x128xf32>
      %35 = arith.addf %32, %34 : vector<128x128xf32>
      %36 = arith.addf %35, %3 : vector<128x128xf32>
      %c0_23 = arith.constant 0 : index
      %c0_24 = arith.constant 0 : index
      %37 = vector.load %arg7[%c0_23, %c0_24] : memref<128x128xf32, #tpu.memory_space<vmem>>, vector<128x128xf32>
      tpu.vector_store %arg7[%c0_23, %c0_24], %36 {strides = array<i32>} : memref<128x128xf32, #tpu.memory_space<vmem>>, vector<128x128xf32>,
    } else {
    }
    return
  }
  func.func @transform_0(%arg0: i32, %arg1: i32) -> (i32, i32) {
    %c0_i32 = arith.constant 0 : i32
    %c0_i32_0 = arith.constant 0 : i32
    return %arg0, %c0_i32 : i32, i32
  }
  func.func @transform_1(%arg0: i32, %arg1: i32) -> (i32, i32) {
    %c0_i32 = arith.constant 0 : i32
    %c0_i32_0 = arith.constant 0 : i32
    return %c0_i32, %arg1 : i32, i32
  }
  func.func @transform_2(%arg0: i32, %arg1: i32) -> (i32, i32) {
    %c0_i32 = arith.constant 0 : i32
    %c0_i32_0 = arith.constant 0 : i32
    return %c0_i32, %arg1 : i32, i32
  }
  func.func @transform_3(%arg0: i32, %arg1: i32) -> (i32, i32) {
    %c0_i32 = arith.constant 0 : i32
    %c0_i32_0 = arith.constant 0 : i32
    return %arg1, %c0_i32 : i32, i32
  }
  func.func @transform_4(%arg0: i32, %arg1: i32) -> (i32, i32) {
    %c0_i32 = arith.constant 0 : i32
    %c0_i32_0 = arith.constant 0 : i32
    %c0_i32_1 = arith.constant 0 : i32
    return %c0_i32, %c0_i32_0 : i32, i32
  }
  func.func @transform_5(%arg0: i32, %arg1: i32) -> (i32, i32) {
    %c0_i32 = arith.constant 0 : i32
    %c0_i32_0 = arith.constant 0 : i32
    return %arg0, %c0_i32 : i32, i32
  }
}

</mosaic_0001>

<llo_original>
// kernel: tpu_custom_call.1
$region0: #{tpu_custom_call.1}
  #allocation0 [shape = 'u32[]', space=smem, size = 0x4, offset = 0x4, fixed_abs, tag = 'smem constant byte address 0x4 - core index']
  #allocation1 [shape = 'u32[144,128]{1,0:T(1,128)}', space=vmem, size = 0x12000, scoped, tag = 'internal scratch']
  #allocation2 [shape = 'f32[128,128]{1,0:T(8,128)}', space=vmem, size = 0x10000, scoped, tag = 'scratch operand']
  %s0 = inlined_call_operand.hbm [shape: f32[256,128], index: 0, kind: input, shape index: {}]
  %s1 = inlined_call_operand.hbm [shape: bf16[128,512], index: 1, kind: input, shape index: {}]
  %s2 = inlined_call_operand.vmem [shape: f32[1,512], index: 2, kind: input, shape index: {}]
  %s3 = inlined_call_operand.hbm [shape: bf16[512,128], index: 3, kind: input, shape index: {}]
  %s4 = inlined_call_operand.vmem [shape: f32[1,128], index: 4, kind: input, shape index: {}]
  %s5 = inlined_call_operand.hbm [shape: f32[256,128], index: 5, kind: output, shape index: {}]
  %s6 = sld [smem:[#allocation0]]
  $region73: #{tpu_custom_call.1} parent=0
    _
  %s8 = ssub.s32 1, %s6
  %s9 = scalar_select 0, %s8, %s6
  $region1: #{tpu_custom_call.1} parent=0
    #allocation3 [shape = 'u8[131072]{0}', space=vmem, size = 0x20000, scoped, tag = 'input window, operand 0']
    #allocation4 [shape = 's32[2]{0}', space=sflag, size = 0x8, scoped, tag = 'scoped memory for tpu_custom_call.1']
    #allocation5 [shape = 's32[2]{0}', space=sflag, size = 0x8, scoped, tag = 'scoped memory for tpu_custom_call.1']
    #allocation6 [shape = 'u8[131072]{0}', space=vmem, size = 0x20000, scoped, tag = 'input window, operand 1, single buffered']
    #allocation7 [shape = 's32[1]{0}', space=sflag, size = 0x4, scoped, tag = 'scoped memory for tpu_custom_call.1']
    #allocation8 [shape = 'u8[131072]{0}', space=vmem, size = 0x20000, scoped, tag = 'input window, operand 3, single buffered']
    #allocation9 [shape = 'u8[131072]{0}', space=vmem, size = 0x20000, scoped, tag = 'output window, operand 0']
    %10 = vsyncpa [#allocation4], 0
    %s11 = scalar_lea.sflag [#allocation4], 1
    %12 = vsyncpa %s11, 0
    %13 = vsyncpa [#allocation7], 0
    %14 = vsyncpa [#allocation5], 0
    %s15 = scalar_lea.sflag [#allocation5], 1
    %16 = vsyncpa %s15, 0
    loop: start=0, step=1, limit=4
    $region2: #{tpu_custom_call.1} parent=1 // loop_pre_header
      _
    $region3: #{tpu_custom_call.1} parent=1 // loop_header
      %s18 = sphi 0, %s22
      %p19 = scmp.ge.s32.totalorder %s18, 4
      %s25 = sphi 0, %s37
      %s26 = sphi 0, %s33
      %s27 = sphi 0, %s25
      %s28 = sphi 0, %s26
      %s29 = sphi 0, %s27
      %s30 = sphi 0, %s28
      %s40 = sphi 0, %s42
      %s43 = sphi 0, %s40
      %s44 = sphi 0, %s43
      %s60 = sphi 0, %s44
      %s66 = sphi 0, %s68
      %s69 = sphi 0, %s66
      %s70 = sphi 0, %s69
      %s86 = sphi 0, %s70
      %s92 = sphi 0, %s94
      %s95 = sphi 0, %s92
      %s96 = sphi 0, %s95
      %s112 = sphi 0, %s96
      %s118 = sphi 0, %s120
      %s121 = sphi 0, %s118
      %s122 = sphi 0, %s121
      %s138 = sphi 0, %s122
      %s142 = sphi 0, %s142
      %s144 = sphi 0, %s142
      %s145 = sphi 0, %s144
      %s159 = sphi 0, %s145
      %s165 = sphi 0, %s167
      %s168 = sphi 0, %s165
      %s169 = sphi 0, %s168
      %s185 = sphi 0, %s169
    $region4: #{tpu_custom_call.1} parent=1 // loop_header_branch
      %21 = sbr.rel (%p19) target = $region8
    $region5: #{tpu_custom_call.1} parent=1 // loop_body
      %s23 = ssub.s32 %s18, 1
      %s24 = ssub.s32 %s18, 2
      %s31 = sadd.s32 1, %s26
      %p32 = scmp.ge.s32.totalorder %s31, 1
      %s33 = scalar_select %p32, 0, %s31
      %s34 = sadd.s32 1, %s25
      %s35 = scalar_select %p32, %s34, %s25
      %p36 = scmp.ge.s32.totalorder %s35, 2
      %s37 = scalar_select %p36, 0, %s35
      %s38 = ssub.s32 %s25, %s37
      %p39 = scmp.eq.s32.totalorder %s38, 0
      %s41 = sadd.s32 %s40, 1
      %s42 = scalar_select %p39, %s40, %s41
      %p45 = pneg %p39
      %p46 = scmp.eq.s32.totalorder %s18, 1
      %p47 = por %p45, %p46
      %p48 = scmp.ne.s32.totalorder %s40, %s43
      %p49 = scmp.eq.s32.totalorder %s18, 0
      %p50 = por %p48, %p49
      %p51 = scmp.ne.s32.totalorder %s40, %s43
      %p52 = scmp.eq.s32.totalorder %s23, 1
      %p53 = por %p51, %p52
      %p54 = scmp.ne.s32.totalorder %s43, %s44
      %p55 = scmp.eq.s32.totalorder %s23, 0
      %p56 = por %p54, %p55
      %p57 = scmp.ne.s32.totalorder %s43, %s44
      %p58 = scmp.eq.s32.totalorder %s24, 1
      %p59 = por %p57, %p58
      %p61 = scmp.ne.s32.totalorder %s44, %s60
      %p62 = scmp.eq.s32.totalorder %s24, 0
      %p63 = por %p61, %p62
      %s64 = ssub.s32 %s26, %s33
      %p65 = scmp.eq.s32.totalorder %s64, 0
      %s67 = sadd.s32 %s66, 1
      %s68 = scalar_select %p65, %s66, %s67
      %p71 = pneg %p65
      %p72 = scmp.eq.s32.totalorder %s18, 1
      %p73 = por %p71, %p72
      %p74 = scmp.ne.s32.totalorder %s66, %s69
      %p75 = scmp.eq.s32.totalorder %s18, 0
      %p76 = por %p74, %p75
      %p77 = scmp.ne.s32.totalorder %s66, %s69
      %p78 = scmp.eq.s32.totalorder %s23, 1
      %p79 = por %p77, %p78
      %p80 = scmp.ne.s32.totalorder %s69, %s70
      %p81 = scmp.eq.s32.totalorder %s23, 0
      %p82 = por %p80, %p81
      %p83 = scmp.ne.s32.totalorder %s69, %s70
      %p84 = scmp.eq.s32.totalorder %s24, 1
      %p85 = por %p83, %p84
      %p87 = scmp.ne.s32.totalorder %s70, %s86
      %p88 = scmp.eq.s32.totalorder %s24, 0
      %p89 = por %p87, %p88
      %s90 = ssub.s32 %s26, %s33
      %p91 = scmp.eq.s32.totalorder %s90, 0
      %s93 = sadd.s32 %s92, 1
      %s94 = scalar_select %p91, %s92, %s93
      %p97 = pneg %p91
      %p98 = scmp.eq.s32.totalorder %s18, 1
      %p99 = por %p97, %p98
      %p100 = scmp.ne.s32.totalorder %s92, %s95
      %p101 = scmp.eq.s32.totalorder %s18, 0
      %p102 = por %p100, %p101
      %p103 = scmp.ne.s32.totalorder %s92, %s95
      %p104 = scmp.eq.s32.totalorder %s23, 1
      %p105 = por %p103, %p104
      %p106 = scmp.ne.s32.totalorder %s95, %s96
      %p107 = scmp.eq.s32.totalorder %s23, 0
      %p108 = por %p106, %p107
      %p109 = scmp.ne.s32.totalorder %s95, %s96
      %p110 = scmp.eq.s32.totalorder %s24, 1
      %p111 = por %p109, %p110
      %p113 = scmp.ne.s32.totalorder %s96, %s112
      %p114 = scmp.eq.s32.totalorder %s24, 0
      %p115 = por %p113, %p114
      %s116 = ssub.s32 %s26, %s33
      %p117 = scmp.eq.s32.totalorder %s116, 0
      %s119 = sadd.s32 %s118, 1
      %s120 = scalar_select %p117, %s118, %s119
      %p123 = pneg %p117
      %p124 = scmp.eq.s32.totalorder %s18, 1
      %p125 = por %p123, %p124
      %p126 = scmp.ne.s32.totalorder %s118, %s121
      %p127 = scmp.eq.s32.totalorder %s18, 0
      %p128 = por %p126, %p127
      %p129 = scmp.ne.s32.totalorder %s118, %s121
      %p130 = scmp.eq.s32.totalorder %s23, 1
      %p131 = por %p129, %p130
      %p132 = scmp.ne.s32.totalorder %s121, %s122
      %p133 = scmp.eq.s32.totalorder %s23, 0
      %p134 = por %p132, %p133
      %p135 = scmp.ne.s32.totalorder %s121, %s122
      %p136 = scmp.eq.s32.totalorder %s24, 1
      %p137 = por %p135, %p136
      %p139 = scmp.ne.s32.totalorder %s122, %s138
      %p140 = scmp.eq.s32.totalorder %s24, 0
      %p141 = por %p139, %p140
      %s143 = sadd.s32 %s142, 1
      %p146 = scmp.eq.s32.totalorder %s18, 1
      %p147 = scmp.ne.s32.totalorder %s142, %s144
      %p148 = scmp.eq.s32.totalorder %s18, 0
      %p149 = por %p147, %p148
      %p150 = scmp.ne.s32.totalorder %s142, %s144
      %p151 = scmp.eq.s32.totalorder %s23, 1
      %p152 = por %p150, %p151
      %p153 = scmp.ne.s32.totalorder %s144, %s145
      %p154 = scmp.eq.s32.totalorder %s23, 0
      %p155 = por %p153, %p154
      %p156 = scmp.ne.s32.totalorder %s144, %s145
      %p157 = scmp.eq.s32.totalorder %s24, 1
      %p158 = por %p156, %p157
      %p160 = scmp.ne.s32.totalorder %s145, %s159
      %p161 = scmp.eq.s32.totalorder %s24, 0
      %p162 = por %p160, %p161
      %s163 = ssub.s32 %s25, %s37
      %p164 = scmp.eq.s32.totalorder %s163, 0
      %s166 = sadd.s32 %s165, 1
      %s167 = scalar_select %p164, %s165, %s166
      %p170 = pneg %p164
      %p171 = scmp.eq.s32.totalorder %s18, 1
      %p172 = por %p170, %p171
      %p173 = scmp.ne.s32.totalorder %s165, %s168
      %p174 = scmp.eq.s32.totalorder %s18, 0
      %p175 = por %p173, %p174
      %p176 = scmp.ne.s32.totalorder %s165, %s168
      %p177 = scmp.eq.s32.totalorder %s23, 1
      %p178 = por %p176, %p177
      %p179 = scmp.ne.s32.totalorder %s168, %s169
      %p180 = scmp.eq.s32.totalorder %s23, 0
      %p181 = por %p179, %p180
      %p182 = scmp.ne.s32.totalorder %s168, %s169
      %p183 = scmp.eq.s32.totalorder %s24, 1
      %p184 = por %p182, %p183
      %p186 = scmp.ne.s32.totalorder %s169, %s185
      %p187 = scmp.eq.s32.totalorder %s24, 0
      %p188 = por %p186, %p187
      %p189 = scmp.le.s32.totalorder 1, %s18
      %p190 = scmp.lt.s32.totalorder %s18, 3
      %p191 = pnand %p189, %p190
      %p192 = pneg %p191
      // Predicated region
      $region9: #{tpu_custom_call.1} parent=5 // pred_check
        _
      $region10: #{tpu_custom_call.1} parent=5 // pred_check_branch
        %194 = sbr.rel (%p191) target = $region12
      $region11: #{tpu_custom_call.1} parent=5 // pred_region
        %s195 = ssub.s32 %s18, 1
        // Predicated region
        $region13: #{tpu_custom_call.1} parent=11 // pred_check
          %p196 = pneg %p82
        $region14: #{tpu_custom_call.1} parent=11 // pred_check_branch
          %198 = sbr.rel (%p196) target = $region16
        $region15: #{tpu_custom_call.1} parent=11 // pred_region
          %s199 = smul.u32 4, %s28
          %s201 = ssub.s32 4096, 4096
          %202 = vsyncadd [#allocation7], %s201
          %s203 = smul.addr %s199, 64
          %s204 = scalar_lea.hbm %s1, %s203
          %s205 = sshll.u32 [#allocation6], 4
          %s206 = int_to_ptr.vmem [resolvable:$true] %s205
          %211 = dma.hbm_to_vmem [thread:$0]  %s204, 4096, %s206, [#allocation7], 256, 256, 16
        $region16: #{tpu_custom_call.1} parent=11 // pred_fallthru
          _
        // Predicated region
        $region17: #{tpu_custom_call.1} parent=11 // pred_check
          %p212 = pneg %p108
        $region18: #{tpu_custom_call.1} parent=11 // pred_check_branch
          %214 = sbr.rel (%p212) target = $region20
        $region19: #{tpu_custom_call.1} parent=11 // pred_region
          %s215 = smul.u32 4, %s28
          %p216 = scmp.lt.s32.totalorder %s215, 3
          %s217 = scalar_select %p216, %s215, 3
          %s218 = scalar_lea.vmem %s2, %s217
          %s219 = smul.u32 4, %s28
        $region20: #{tpu_custom_call.1} parent=11 // pred_fallthru
          _
        // Predicated region
        $region21: #{tpu_custom_call.1} parent=11 // pred_check
          %p220 = pneg %p134
        $region22: #{tpu_custom_call.1} parent=11 // pred_check_branch
          %222 = sbr.rel (%p220) target = $region24
        $region23: #{tpu_custom_call.1} parent=11 // pred_region
          %s223 = smul.u32 64, %s28
          %s225 = ssub.s32 4096, 4096
          %226 = vsyncadd [#allocation7], %s225
          %s227 = smul.addr %s223, 64
          %s228 = scalar_lea.hbm %s3, %s227
          %s229 = sshll.u32 [#allocation8], 4
          %s230 = int_to_ptr.vmem [resolvable:$true] %s229
          %235 = dma.hbm_to_vmem [thread:$0]  %s228, 4096, %s230, [#allocation7], 64, 64, 4
        $region24: #{tpu_custom_call.1} parent=11 // pred_fallthru
          _
        // Predicated region
        $region25: #{tpu_custom_call.1} parent=11 // pred_check
          %p236 = pneg %p155
        $region26: #{tpu_custom_call.1} parent=11 // pred_check_branch
          %238 = sbr.rel (%p236) target = $region28
        $region27: #{tpu_custom_call.1} parent=11 // pred_region
          _
        $region28: #{tpu_custom_call.1} parent=11 // pred_fallthru
          _
      $region12: #{tpu_custom_call.1} parent=5 // pred_fallthru
        _
      %p239 = scmp.lt.s32.totalorder %s18, 2
      // Predicated region
      $region29: #{tpu_custom_call.1} parent=5 // pred_check
        %p240 = pneg %p239
      $region30: #{tpu_custom_call.1} parent=5 // pred_check_branch
        %242 = sbr.rel (%p240) target = $region32
      $region31: #{tpu_custom_call.1} parent=5 // pred_region
        // Predicated region
        $region33: #{tpu_custom_call.1} parent=31 // pred_check
          %p243 = pneg %p50
        $region34: #{tpu_custom_call.1} parent=31 // pred_check_branch
          %245 = sbr.rel (%p243) target = $region36
        $region35: #{tpu_custom_call.1} parent=31 // pred_region
          %s246 = sand.u32 %s40, 1
          %s247 = scalar_lea.sflag [#allocation4], %s246
          %s248 = sand.u32 %s40, 1
          %s249 = smul.addr %s248, 128
          %s250 = scalar_lea.vmem [#allocation3], %s249
          %s251 = smul.u32 16, %s25
          %s253 = ssub.s32 2048, 2048
          %254 = vsyncadd %s247, %s253
          %s255 = smul.addr %s251, 128
          %s256 = scalar_lea.hbm %s0, %s255
          %s257 = sshll.u32 %s250, 4
          %s258 = int_to_ptr.vmem [resolvable:$true] %s257
          %263 = dma.hbm_to_vmem [thread:$0]  %s256, 2048, %s258, %s247, 128, 128, 8
        $region36: #{tpu_custom_call.1} parent=31 // pred_fallthru
          _
      $region32: #{tpu_custom_call.1} parent=5 // pred_fallthru
        _
      %p264 = scmp.le.s32.totalorder 1, %s18
      %p265 = scmp.lt.s32.totalorder %s18, 3
      %p266 = pnand %p264, %p265
      %p267 = pneg %p266
      // Predicated region
      $region37: #{tpu_custom_call.1} parent=5 // pred_check
        _
      $region38: #{tpu_custom_call.1} parent=5 // pred_check_branch
        %269 = sbr.rel (%p266) target = $region40
      $region39: #{tpu_custom_call.1} parent=5 // pred_region
        %s270 = ssub.s32 %s18, 1
        %s271 = sand.u32 %s43, 1
        %s272 = scalar_lea.sflag [#allocation4], %s271
        %s273 = sand.u32 %s43, 1
        %s274 = smul.addr %s273, 128
        %s275 = scalar_lea.vmem [#allocation3], %s274
        // Predicated region
        $region41: #{tpu_custom_call.1} parent=39 // pred_check
          %p276 = pneg %p56
        $region42: #{tpu_custom_call.1} parent=39 // pred_check_branch
          %278 = sbr.rel (%p276) target = $region44
        $region43: #{tpu_custom_call.1} parent=39 // pred_region
          %279 = dma.done %s272, 2048
        $region44: #{tpu_custom_call.1} parent=39 // pred_fallthru
          _
        // Predicated region
        $region45: #{tpu_custom_call.1} parent=39 // pred_check
          %p280 = pneg %p82
        $region46: #{tpu_custom_call.1} parent=39 // pred_check_branch
          %282 = sbr.rel (%p280) target = $region48
        $region47: #{tpu_custom_call.1} parent=39 // pred_region
          %283 = dma.done [#allocation7], 4096
        $region48: #{tpu_custom_call.1} parent=39 // pred_fallthru
          _
        // Predicated region
        $region49: #{tpu_custom_call.1} parent=39 // pred_check
          %p284 = pneg %p134
        $region50: #{tpu_custom_call.1} parent=39 // pred_check_branch
          %286 = sbr.rel (%p284) target = $region52
        $region51: #{tpu_custom_call.1} parent=39 // pred_region
          %287 = dma.done [#allocation7], 4096
        $region52: #{tpu_custom_call.1} parent=39 // pred_fallthru
          _
        %s288 = sand.u32 %s43, 1
        %s289 = scalar_lea.sflag [#allocation4], %s288
        %s290 = sand.u32 %s43, 1
        %s291 = smul.addr %s290, 128
        %s292 = scalar_lea.vmem [#allocation3], %s291
        %p293 = pneg %p56
        %p294 = pneg %p53
        %p295 = pneg %p82
        %p296 = pneg %p79
        %s297 = smul.u32 4, %s28
        %p298 = scmp.lt.s32.totalorder %s297, 3
        %s299 = scalar_select %p298, %s297, 3
        %s300 = scalar_lea.vmem %s2, %s299
        %p301 = pneg %p108
        %p302 = pneg %p105
        %p303 = pneg %p134
        %p304 = pneg %p131
        %p305 = pneg %p155
        %p306 = pneg %p152
        %p307 = pneg %p181
        %p308 = pneg %p178
        %s309 = sand.u32 %s168, 1
        %s310 = scalar_lea.sflag [#allocation5], %s309
        %s311 = sand.u32 %s168, 1
        %s312 = smul.addr %s311, 128
        %s313 = scalar_lea.vmem [#allocation9], %s312
        %s314 = smul.u32 16, %s27
        %s315 = smul.u32 4, %s28
        %s316 = smul.u32 4, %s28
        %p317 = scmp.lt.s32.totalorder %s316, 3
        %s318 = scalar_select %p317, %s316, 3
        %s319 = scalar_lea.vmem %s2, %s318
        %s320 = smul.u32 4, %s28
        %s321 = smul.u32 64, %s28
        %s322 = smul.u32 16, %s27
        %p324 = scmp.eq.s32.totalorder %s28, 0
        // Predicated region
        $region53: #{tpu_custom_call.1} parent=39 // pred_check
          %p325 = pneg %p324
        $region54: #{tpu_custom_call.1} parent=39 // pred_check_branch
          %327 = sbr.rel (%p325) target = $region56
        $region55: #{tpu_custom_call.1} parent=39 // pred_region
          %328 = vst [vmem:[#allocation2] sm:$0xff] 0.0
          %329 = vst [vmem:[#allocation2 + $0x8] sm:$0xff] 0.0
          %330 = vst [vmem:[#allocation2 + $0x10] sm:$0xff] 0.0
          %331 = vst [vmem:[#allocation2 + $0x18] sm:$0xff] 0.0
          %332 = vst [vmem:[#allocation2 + $0x20] sm:$0xff] 0.0
          %333 = vst [vmem:[#allocation2 + $0x28] sm:$0xff] 0.0
          %334 = vst [vmem:[#allocation2 + $0x30] sm:$0xff] 0.0
          %335 = vst [vmem:[#allocation2 + $0x38] sm:$0xff] 0.0
          %336 = vst [vmem:[#allocation2 + $0x40] sm:$0xff] 0.0
          %337 = vst [vmem:[#allocation2 + $0x48] sm:$0xff] 0.0
          %338 = vst [vmem:[#allocation2 + $0x50] sm:$0xff] 0.0
          %339 = vst [vmem:[#allocation2 + $0x58] sm:$0xff] 0.0
          %340 = vst [vmem:[#allocation2 + $0x60] sm:$0xff] 0.0
          %341 = vst [vmem:[#allocation2 + $0x68] sm:$0xff] 0.0
          %342 = vst [vmem:[#allocation2 + $0x70] sm:$0xff] 0.0
          %343 = vst [vmem:[#allocation2 + $0x78] sm:$0xff] 0.0
        $region56: #{tpu_custom_call.1} parent=39 // pred_fallthru
          _
        %v344 = vld [vmem:[%s275] sm:$0xff]
        %v345 = vld [vmem:[%s275 + $0x8] sm:$0xff]
        %v346 = vld [vmem:[%s275 + $0x10] sm:$0xff]
        %v347 = vld [vmem:[%s275 + $0x18] sm:$0xff]
        %v348 = vld [vmem:[%s275 + $0x20] sm:$0xff]
        %v349 = vld [vmem:[%s275 + $0x28] sm:$0xff]
        %v350 = vld [vmem:[%s275 + $0x30] sm:$0xff]
        %v351 = vld [vmem:[%s275 + $0x38] sm:$0xff]
        %v352 = vld [vmem:[%s275 + $0x40] sm:$0xff]
        %v353 = vld [vmem:[%s275 + $0x48] sm:$0xff]
        %v354 = vld [vmem:[%s275 + $0x50] sm:$0xff]
        %v355 = vld [vmem:[%s275 + $0x58] sm:$0xff]
        %v356 = vld [vmem:[%s275 + $0x60] sm:$0xff]
        %v357 = vld [vmem:[%s275 + $0x68] sm:$0xff]
        %v358 = vld [vmem:[%s275 + $0x70] sm:$0xff]
        %v359 = vld [vmem:[%s275 + $0x78] sm:$0xff]
        %v360 = vpack.c.bf16 %v345, %v344
        %v361 = vpack.c.bf16 %v347, %v346
        %v362 = vpack.c.bf16 %v349, %v348
        %v363 = vpack.c.bf16 %v351, %v350
        %v364 = vpack.c.bf16 %v353, %v352
        %v365 = vpack.c.bf16 %v355, %v354
        %v366 = vpack.c.bf16 %v357, %v356
        %v367 = vpack.c.bf16 %v359, %v358
        %v368 = vld [vmem:[#allocation6] sm:$0xff]
        %v369 = vld [vmem:[#allocation6 + $0x8] sm:$0xff]
        %v370 = vld [vmem:[#allocation6 + $0x10] sm:$0xff]
        %v371 = vld [vmem:[#allocation6 + $0x18] sm:$0xff]
        %v372 = vld [vmem:[#allocation6 + $0x20] sm:$0xff]
        %v373 = vld [vmem:[#allocation6 + $0x28] sm:$0xff]
        %v374 = vld [vmem:[#allocation6 + $0x30] sm:$0xff]
        %v375 = vld [vmem:[#allocation6 + $0x38] sm:$0xff]
        %v376 = vld [vmem:[#allocation6 + $0x40] sm:$0xff]
        %v377 = vld [vmem:[#allocation6 + $0x48] sm:$0xff]
        %v378 = vld [vmem:[#allocation6 + $0x50] sm:$0xff]
        %v379 = vld [vmem:[#allocation6 + $0x58] sm:$0xff]
        %v380 = vld [vmem:[#allocation6 + $0x60] sm:$0xff]
        %v381 = vld [vmem:[#allocation6 + $0x68] sm:$0xff]
        %v382 = vld [vmem:[#allocation6 + $0x70] sm:$0xff]
        %v383 = vld [vmem:[#allocation6 + $0x78] sm:$0xff]
        %v384 = vld [vmem:[#allocation6 + $0x80] sm:$0xff]
        %v385 = vld [vmem:[#allocation6 + $0x88] sm:$0xff]
        %v386 = vld [vmem:[#allocation6 + $0x90] sm:$0xff]
        %v387 = vld [vmem:[#allocation6 + $0x98] sm:$0xff]
        %v388 = vld [vmem:[#allocation6 + $0xa0] sm:$0xff]
        %v389 = vld [vmem:[#allocation6 + $0xa8] sm:$0xff]
        %v390 = vld [vmem:[#allocation6 + $0xb0] sm:$0xff]
        %v391 = vld [vmem:[#allocation6 + $0xb8] sm:$0xff]
        %v392 = vld [vmem:[#allocation6 + $0xc0] sm:$0xff]
        %v393 = vld [vmem:[#allocation6 + $0xc8] sm:$0xff]
        %v394 = vld [vmem:[#allocation6 + $0xd0] sm:$0xff]
        %v395 = vld [vmem:[#allocation6 + $0xd8] sm:$0xff]
        %v396 = vld [vmem:[#allocation6 + $0xe0] sm:$0xff]
        %v397 = vld [vmem:[#allocation6 + $0xe8] sm:$0xff]
        %v398 = vld [vmem:[#allocation6 + $0xf0] sm:$0xff]
        %v399 = vld [vmem:[#allocation6 + $0xf8] sm:$0xff]
        %v400 = vld [vmem:[%s319] sm:$0xf]
        %v402 = vlaneseq
        %v403 = vshrl.u32 %v402, 7
        %v404 = vsub.s32 0, %v403
        %v405 = vrot.slane %v400, %v404
        %v406 = vlaneseq
        %v407 = vshrl.u32 %v406, 7
        %v408 = vsub.s32 1, %v407
        %v409 = vrot.slane %v400, %v408
        %v410 = vlaneseq
        %v411 = vshrl.u32 %v410, 7
        %v412 = vsub.s32 2, %v411
        %v413 = vrot.slane %v400, %v412
        %v414 = vlaneseq
        %v415 = vshrl.u32 %v414, 7
        %v416 = vsub.s32 3, %v415
        %v417 = vrot.slane %v400, %v416
        %v454 = vunpack.c.l.b16 %v368
        %v455 = vunpack.c.h.b16 %v368
        %v456 = vunpack.c.l.b16 %v369
        %v457 = vunpack.c.h.b16 %v369
        %v458 = vunpack.c.l.b16 %v370
        %v459 = vunpack.c.h.b16 %v370
        %v460 = vunpack.c.l.b16 %v371
        %v461 = vunpack.c.h.b16 %v371
        %v462 = vunpack.c.l.b16 %v372
        %v463 = vunpack.c.h.b16 %v372
        %v464 = vunpack.c.l.b16 %v373
        %v465 = vunpack.c.h.b16 %v373
        %v466 = vunpack.c.l.b16 %v374
        %v467 = vunpack.c.h.b16 %v374
        %v468 = vunpack.c.l.b16 %v375
        %v469 = vunpack.c.h.b16 %v375
        %v470 = vunpack.c.l.b16 %v376
        %v471 = vunpack.c.h.b16 %v376
        %v472 = vunpack.c.l.b16 %v377
        %v473 = vunpack.c.h.b16 %v377
        %v474 = vunpack.c.l.b16 %v378
        %v475 = vunpack.c.h.b16 %v378
        %v476 = vunpack.c.l.b16 %v379
        %v477 = vunpack.c.h.b16 %v379
        %v478 = vunpack.c.l.b16 %v380
        %v479 = vunpack.c.h.b16 %v380
        %v480 = vunpack.c.l.b16 %v381
        %v481 = vunpack.c.h.b16 %v381
        %v482 = vunpack.c.l.b16 %v382
        %v483 = vunpack.c.h.b16 %v382
        %v484 = vunpack.c.l.b16 %v383
        %v485 = vunpack.c.h.b16 %v383
        %v486 = vunpack.c.l.b16 %v384
        %v487 = vunpack.c.h.b16 %v384
        %v488 = vunpack.c.l.b16 %v385
        %v489 = vunpack.c.h.b16 %v385
        %v490 = vunpack.c.l.b16 %v386
        %v491 = vunpack.c.h.b16 %v386
        %v492 = vunpack.c.l.b16 %v387
        %v493 = vunpack.c.h.b16 %v387
        %v494 = vunpack.c.l.b16 %v388
        %v495 = vunpack.c.h.b16 %v388
        %v496 = vunpack.c.l.b16 %v389
        %v497 = vunpack.c.h.b16 %v389
        %v498 = vunpack.c.l.b16 %v390
        %v499 = vunpack.c.h.b16 %v390
        %v500 = vunpack.c.l.b16 %v391
        %v501 = vunpack.c.h.b16 %v391
        %v502 = vunpack.c.l.b16 %v392
        %v503 = vunpack.c.h.b16 %v392
        %v504 = vunpack.c.l.b16 %v393
        %v505 = vunpack.c.h.b16 %v393
        %v506 = vunpack.c.l.b16 %v394
        %v507 = vunpack.c.h.b16 %v394
        %v508 = vunpack.c.l.b16 %v395
        %v509 = vunpack.c.h.b16 %v395
        %v510 = vunpack.c.l.b16 %v396
        %v511 = vunpack.c.h.b16 %v396
        %v512 = vunpack.c.l.b16 %v397
        %v513 = vunpack.c.h.b16 %v397
        %v514 = vunpack.c.l.b16 %v398
        %v515 = vunpack.c.h.b16 %v398
        %v516 = vunpack.c.l.b16 %v399
        %v517 = vunpack.c.h.b16 %v399
        %v518 = vpack.c.b16 %v458, %v454
        %v519 = vpack.c.b16 %v459, %v455
        %v520 = vpack.c.b16 %v460, %v456
        %v521 = vpack.c.b16 %v461, %v457
        %v522 = vpack.c.b16 %v466, %v462
        %v523 = vpack.c.b16 %v467, %v463
        %v524 = vpack.c.b16 %v468, %v464
        %v525 = vpack.c.b16 %v469, %v465
        %v526 = vpack.c.b16 %v474, %v470
        %v527 = vpack.c.b16 %v475, %v471
        %v528 = vpack.c.b16 %v476, %v472
        %v529 = vpack.c.b16 %v477, %v473
        %v530 = vpack.c.b16 %v482, %v478
        %v531 = vpack.c.b16 %v483, %v479
        %v532 = vpack.c.b16 %v484, %v480
        %v533 = vpack.c.b16 %v485, %v481
        %v534 = vpack.c.b16 %v490, %v486
        %v535 = vpack.c.b16 %v491, %v487
        %v536 = vpack.c.b16 %v492, %v488
        %v537 = vpack.c.b16 %v493, %v489
        %v538 = vpack.c.b16 %v498, %v494
        %v539 = vpack.c.b16 %v499, %v495
        %v540 = vpack.c.b16 %v500, %v496
        %v541 = vpack.c.b16 %v501, %v497
        %v542 = vpack.c.b16 %v506, %v502
        %v543 = vpack.c.b16 %v507, %v503
        %v544 = vpack.c.b16 %v508, %v504
        %v545 = vpack.c.b16 %v509, %v505
        %v546 = vpack.c.b16 %v514, %v510
        %v547 = vpack.c.b16 %v515, %v511
        %v548 = vpack.c.b16 %v516, %v512
        %v549 = vpack.c.b16 %v517, %v513
        %582 = vmatprep.subr.bf16.mxu0 %v519
        %583 = vmatpush1.bf16.msra.mxu0 %v518
        %584 = vmatprep.subr.bf16.mxu0 %v523
        %585 = vmatpush1.bf16.msra.mxu0 %v522
        %586 = vmatprep.subr.bf16.mxu0 %v527
        %587 = vmatpush1.bf16.msra.mxu0 %v526
        %588 = vmatprep.subr.bf16.mxu0 %v531
        %589 = vmatpush1.bf16.msra.mxu0 %v530
        %590 = vmatprep.subr.bf16.mxu0 %v535
        %591 = vmatpush1.bf16.msra.mxu0 %v534
        %592 = vmatprep.subr.bf16.mxu0 %v539
        %593 = vmatpush1.bf16.msra.mxu0 %v538
        %594 = vmatprep.subr.bf16.mxu0 %v543
        %595 = vmatpush1.bf16.msra.mxu0 %v542
        %596 = vmatprep.subr.bf16.mxu0 %v547
        %597 = vmatpush1.bf16.msra.mxu0 %v546
        %598 = vmatprep.subr.bf16.mxu0 0
        %599 = vmatpush1.bf16.msra.mxu0 0
        %600 = vmatprep.subr.bf16.mxu0 0
        %601 = vmatpush1.bf16.msra.mxu0 0
        %602 = vmatprep.subr.bf16.mxu0 0
        %603 = vmatpush1.bf16.msra.mxu0 0
        %604 = vmatprep.subr.bf16.mxu0 0
        %605 = vmatpush1.bf16.msra.mxu0 0
        %606 = vmatprep.subr.bf16.mxu0 0
        %607 = vmatpush1.bf16.msra.mxu0 0
        %608 = vmatprep.subr.bf16.mxu0 0
        %609 = vmatpush1.bf16.msra.mxu0 0
        %610 = vmatprep.subr.bf16.mxu0 0
        %611 = vmatpush1.bf16.msra.mxu0 0
        %612 = vmatprep.subr.bf16.mxu0 0
        %613 = vmatpush1.bf16.msra.mxu0 0
        %614 = vmatprep.mubr.bf16.mxu0 0
        %615 = vmatmul.mubr.bf16.gmra.mrb[0].mxu0 %v360
        %v616 = vpop.f32.mrb[0].mxu0
        %v617 = vadd.f32 %v405, %v616
        %v618 = vpop.f32.mrb[0].mxu0
        %v619 = vadd.f32 %v409, %v618
        %v620 = vpop.f32.mrb[0].mxu0
        %v621 = vadd.f32 %v405, %v620
        %v622 = vpop.f32.mrb[0].mxu0
        %v623 = vadd.f32 %v409, %v622
        %624 = vmatprep.mubr.bf16.mxu0 0
        %625 = vmatmul.mubr.bf16.gmra.mrb[0].mxu0 %v361
        %v626 = vpop.f32.mrb[0].mxu0
        %v627 = vadd.f32 %v405, %v626
        %v628 = vpop.f32.mrb[0].mxu0
        %v629 = vadd.f32 %v409, %v628
        %v630 = vpop.f32.mrb[0].mxu0
        %v631 = vadd.f32 %v405, %v630
        %v632 = vpop.f32.mrb[0].mxu0
        %v633 = vadd.f32 %v409, %v632
        %634 = vmatprep.mubr.bf16.mxu0 0
        %635 = vmatmul.mubr.bf16.gmra.mrb[0].mxu0 %v362
        %v636 = vpop.f32.mrb[0].mxu0
        %v637 = vadd.f32 %v405, %v636
        %v638 = vpop.f32.mrb[0].mxu0
        %v639 = vadd.f32 %v409, %v638
        %v640 = vpop.f32.mrb[0].mxu0
        %v641 = vadd.f32 %v405, %v640
        %v642 = vpop.f32.mrb[0].mxu0
        %v643 = vadd.f32 %v409, %v642
        %644 = vmatprep.mubr.bf16.mxu0 0
        %645 = vmatmul.mubr.bf16.gmra.mrb[0].mxu0 %v363
        %v646 = vpop.f32.mrb[0].mxu0
        %v647 = vadd.f32 %v405, %v646
        %v648 = vpop.f32.mrb[0].mxu0
        %v649 = vadd.f32 %v409, %v648
        %v650 = vpop.f32.mrb[0].mxu0
        %v651 = vadd.f32 %v405, %v650
        %v652 = vpop.f32.mrb[0].mxu0
        %v653 = vadd.f32 %v409, %v652
        %654 = vmatprep.mubr.bf16.mxu0 0
        %655 = vmatmul.mubr.bf16.gmra.mrb[0].mxu0 %v364
        %v656 = vpop.f32.mrb[0].mxu0
        %v657 = vadd.f32 %v405, %v656
        %v658 = vpop.f32.mrb[0].mxu0
        %v659 = vadd.f32 %v409, %v658
        %v660 = vpop.f32.mrb[0].mxu0
        %v661 = vadd.f32 %v405, %v660
        %v662 = vpop.f32.mrb[0].mxu0
        %v663 = vadd.f32 %v409, %v662
        %664 = vmatprep.mubr.bf16.mxu0 0
        %665 = vmatmul.mubr.bf16.gmra.mrb[0].mxu0 %v365
        %v666 = vpop.f32.mrb[0].mxu0
        %v667 = vadd.f32 %v405, %v666
        %v668 = vpop.f32.mrb[0].mxu0
        %v669 = vadd.f32 %v409, %v668
        %v670 = vpop.f32.mrb[0].mxu0
        %v671 = vadd.f32 %v405, %v670
        %v672 = vpop.f32.mrb[0].mxu0
        %v673 = vadd.f32 %v409, %v672
        %674 = vmatprep.mubr.bf16.mxu0 0
        %675 = vmatmul.mubr.bf16.gmra.mrb[0].mxu0 %v366
        %v676 = vpop.f32.mrb[0].mxu0
        %v677 = vadd.f32 %v405, %v676
        %v678 = vpop.f32.mrb[0].mxu0
        %v679 = vadd.f32 %v409, %v678
        %v680 = vpop.f32.mrb[0].mxu0
        %v681 = vadd.f32 %v405, %v680
        %v682 = vpop.f32.mrb[0].mxu0
        %v683 = vadd.f32 %v409, %v682
        %684 = vmatprep.mubr.bf16.mxu0 0
        %685 = vmatmul.mubr.bf16.gmra.mrb[0].mxu0 %v367
        %v686 = vpop.f32.mrb[0].mxu0
        %v687 = vadd.f32 %v405, %v686
        %v688 = vpop.f32.mrb[0].mxu0
        %v689 = vadd.f32 %v409, %v688
        %v690 = vpop.f32.mrb[0].mxu0
        %v691 = vadd.f32 %v405, %v690
        %v692 = vpop.f32.mrb[0].mxu0
        %v693 = vadd.f32 %v409, %v692
        %694 = vdwg.mxu0
        %695 = vmatprep.subr.bf16.mxu0 %v521
        %696 = vmatpush1.bf16.msra.mxu0 %v520
        %697 = vmatprep.subr.bf16.mxu0 %v525
        %698 = vmatpush1.bf16.msra.mxu0 %v524
        %699 = vmatprep.subr.bf16.mxu0 %v529
        %700 = vmatpush1.bf16.msra.mxu0 %v528
        %701 = vmatprep.subr.bf16.mxu0 %v533
        %702 = vmatpush1.bf16.msra.mxu0 %v532
        %703 = vmatprep.subr.bf16.mxu0 %v537
        %704 = vmatpush1.bf16.msra.mxu0 %v536
        %705 = vmatprep.subr.bf16.mxu0 %v541
        %706 = vmatpush1.bf16.msra.mxu0 %v540
        %707 = vmatprep.subr.bf16.mxu0 %v545
        %708 = vmatpush1.bf16.msra.mxu0 %v544
        %709 = vmatprep.subr.bf16.mxu0 %v549
        %710 = vmatpush1.bf16.msra.mxu0 %v548
        %711 = vmatprep.subr.bf16.mxu0 0
        %712 = vmatpush1.bf16.msra.mxu0 0
        %713 = vmatprep.subr.bf16.mxu0 0
        %714 = vmatpush1.bf16.msra.mxu0 0
        %715 = vmatprep.subr.bf16.mxu0 0
        %716 = vmatpush1.bf16.msra.mxu0 0
        %717 = vmatprep.subr.bf16.mxu0 0
        %718 = vmatpush1.bf16.msra.mxu0 0
        %719 = vmatprep.subr.bf16.mxu0 0
        %720 = vmatpush1.bf16.msra.mxu0 0
        %721 = vmatprep.subr.bf16.mxu0 0
        %722 = vmatpush1.bf16.msra.mxu0 0
        %723 = vmatprep.subr.bf16.mxu0 0
        %724 = vmatpush1.bf16.msra.mxu0 0
        %725 = vmatprep.subr.bf16.mxu0 0
        %726 = vmatpush1.bf16.msra.mxu0 0
        %727 = vmatprep.mubr.bf16.mxu0 0
        %728 = vmatmul.mubr.bf16.gmra.mrb[0].mxu0 %v360
        %v729 = vpop.f32.mrb[0].mxu0
        %v730 = vadd.f32 %v413, %v729
        %v731 = vpop.f32.mrb[0].mxu0
        %v732 = vadd.f32 %v417, %v731
        %v733 = vpop.f32.mrb[0].mxu0
        %v734 = vadd.f32 %v413, %v733
        %v735 = vpop.f32.mrb[0].mxu0
        %v736 = vadd.f32 %v417, %v735
        %737 = vmatprep.mubr.bf16.mxu0 0
        %738 = vmatmul.mubr.bf16.gmra.mrb[0].mxu0 %v361
        %v739 = vpop.f32.mrb[0].mxu0
        %v740 = vadd.f32 %v413, %v739
        %v741 = vpop.f32.mrb[0].mxu0
        %v742 = vadd.f32 %v417, %v741
        %v743 = vpop.f32.mrb[0].mxu0
        %v744 = vadd.f32 %v413, %v743
        %v745 = vpop.f32.mrb[0].mxu0
        %v746 = vadd.f32 %v417, %v745
        %747 = vmatprep.mubr.bf16.mxu0 0
        %748 = vmatmul.mubr.bf16.gmra.mrb[0].mxu0 %v362
        %v749 = vpop.f32.mrb[0].mxu0
        %v750 = vadd.f32 %v413, %v749
        %v751 = vpop.f32.mrb[0].mxu0
        %v752 = vadd.f32 %v417, %v751
        %v753 = vpop.f32.mrb[0].mxu0
        %v754 = vadd.f32 %v413, %v753
        %v755 = vpop.f32.mrb[0].mxu0
        %v756 = vadd.f32 %v417, %v755
        %757 = vmatprep.mubr.bf16.mxu0 0
        %758 = vmatmul.mubr.bf16.gmra.mrb[0].mxu0 %v363
        %v759 = vpop.f32.mrb[0].mxu0
        %v760 = vadd.f32 %v413, %v759
        %v761 = vpop.f32.mrb[0].mxu0
        %v762 = vadd.f32 %v417, %v761
        %v763 = vpop.f32.mrb[0].mxu0
        %v764 = vadd.f32 %v413, %v763
        %v765 = vpop.f32.mrb[0].mxu0
        %v766 = vadd.f32 %v417, %v765
        %767 = vmatprep.mubr.bf16.mxu0 0
        %768 = vmatmul.mubr.bf16.gmra.mrb[0].mxu0 %v364
        %v769 = vpop.f32.mrb[0].mxu0
        %v770 = vadd.f32 %v413, %v769
        %v771 = vpop.f32.mrb[0].mxu0
        %v772 = vadd.f32 %v417, %v771
        %v773 = vpop.f32.mrb[0].mxu0
        %v774 = vadd.f32 %v413, %v773
        %v775 = vpop.f32.mrb[0].mxu0
        %v776 = vadd.f32 %v417, %v775
        %777 = vmatprep.mubr.bf16.mxu0 0
        %778 = vmatmul.mubr.bf16.gmra.mrb[0].mxu0 %v365
        %v779 = vpop.f32.mrb[0].mxu0
        %v780 = vadd.f32 %v413, %v779
        %v781 = vpop.f32.mrb[0].mxu0
        %v782 = vadd.f32 %v417, %v781
        %v783 = vpop.f32.mrb[0].mxu0
        %v784 = vadd.f32 %v413, %v783
        %v785 = vpop.f32.mrb[0].mxu0
        %v786 = vadd.f32 %v417, %v785
        %787 = vmatprep.mubr.bf16.mxu0 0
        %788 = vmatmul.mubr.bf16.gmra.mrb[0].mxu0 %v366
        %v789 = vpop.f32.mrb[0].mxu0
        %v790 = vadd.f32 %v413, %v789
        %v791 = vpop.f32.mrb[0].mxu0
        %v792 = vadd.f32 %v417, %v791
        %v793 = vpop.f32.mrb[0].mxu0
        %v794 = vadd.f32 %v413, %v793
        %v795 = vpop.f32.mrb[0].mxu0
        %v796 = vadd.f32 %v417, %v795
        %797 = vmatprep.mubr.bf16.mxu0 0
        %798 = vmatmul.mubr.bf16.gmra.mrb[0].mxu0 %v367
        %v799 = vpop.f32.mrb[0].mxu0
        %v800 = vadd.f32 %v413, %v799
        %v801 = vpop.f32.mrb[0].mxu0
        %v802 = vadd.f32 %v417, %v801
        %v803 = vpop.f32.mrb[0].mxu0
        %v804 = vadd.f32 %v413, %v803
        %v805 = vpop.f32.mrb[0].mxu0
        %v806 = vadd.f32 %v417, %v805
        %807 = vdwg.mxu0
        %v808 = vmul.f32 %v617, %v617
        %v809 = vmul.f32 %v619, %v619
        %v810 = vmul.f32 %v730, %v730
        %v811 = vmul.f32 %v732, %v732
        %v812 = vmul.f32 %v621, %v621
        %v813 = vmul.f32 %v623, %v623
        %v814 = vmul.f32 %v734, %v734
        %v815 = vmul.f32 %v736, %v736
        %v816 = vmul.f32 %v627, %v627
        %v817 = vmul.f32 %v629, %v629
        %v818 = vmul.f32 %v740, %v740
        %v819 = vmul.f32 %v742, %v742
        %v820 = vmul.f32 %v631, %v631
        %v821 = vmul.f32 %v633, %v633
        %v822 = vmul.f32 %v744, %v744
        %v823 = vmul.f32 %v746, %v746
        %v824 = vmul.f32 %v637, %v637
        %v825 = vmul.f32 %v639, %v639
        %v826 = vmul.f32 %v750, %v750
        %v827 = vmul.f32 %v752, %v752
        %v828 = vmul.f32 %v641, %v641
        %v829 = vmul.f32 %v643, %v643
        %v830 = vmul.f32 %v754, %v754
        %v831 = vmul.f32 %v756, %v756
        %v832 = vmul.f32 %v647, %v647
        %v833 = vmul.f32 %v649, %v649
        %v834 = vmul.f32 %v760, %v760
        %v835 = vmul.f32 %v762, %v762
        %v836 = vmul.f32 %v651, %v651
        %v837 = vmul.f32 %v653, %v653
        %v838 = vmul.f32 %v764, %v764
        %v839 = vmul.f32 %v766, %v766
        %v840 = vmul.f32 %v657, %v657
        %v841 = vmul.f32 %v659, %v659
        %v842 = vmul.f32 %v770, %v770
        %v843 = vmul.f32 %v772, %v772
        %v844 = vmul.f32 %v661, %v661
        %v845 = vmul.f32 %v663, %v663
        %v846 = vmul.f32 %v774, %v774
        %v847 = vmul.f32 %v776, %v776
        %v848 = vmul.f32 %v667, %v667
        %v849 = vmul.f32 %v669, %v669
        %v850 = vmul.f32 %v780, %v780
        %v851 = vmul.f32 %v782, %v782
        %v852 = vmul.f32 %v671, %v671
        %v853 = vmul.f32 %v673, %v673
        %v854 = vmul.f32 %v784, %v784
        %v855 = vmul.f32 %v786, %v786
        %v856 = vmul.f32 %v677, %v677
        %v857 = vmul.f32 %v679, %v679
        %v858 = vmul.f32 %v790, %v790
        %v859 = vmul.f32 %v792, %v792
        %v860 = vmul.f32 %v681, %v681
        %v861 = vmul.f32 %v683, %v683
        %v862 = vmul.f32 %v794, %v794
        %v863 = vmul.f32 %v796, %v796
        %v864 = vmul.f32 %v687, %v687
        %v865 = vmul.f32 %v689, %v689
        %v866 = vmul.f32 %v800, %v800
        %v867 = vmul.f32 %v802, %v802
        %v868 = vmul.f32 %v691, %v691
        %v869 = vmul.f32 %v693, %v693
        %v870 = vmul.f32 %v804, %v804
        %v871 = vmul.f32 %v806, %v806
        %v872 = vmul.f32 %v617, %v808
        %v873 = vmul.f32 %v619, %v809
        %v874 = vmul.f32 %v730, %v810
        %v875 = vmul.f32 %v732, %v811
        %v876 = vmul.f32 %v621, %v812
        %v877 = vmul.f32 %v623, %v813
        %v878 = vmul.f32 %v734, %v814
        %v879 = vmul.f32 %v736, %v815
        %v880 = vmul.f32 %v627, %v816
        %v881 = vmul.f32 %v629, %v817
        %v882 = vmul.f32 %v740, %v818
        %v883 = vmul.f32 %v742, %v819
        %v884 = vmul.f32 %v631, %v820
        %v885 = vmul.f32 %v633, %v821
        %v886 = vmul.f32 %v744, %v822
        %v887 = vmul.f32 %v746, %v823
        %v888 = vmul.f32 %v637, %v824
        %v889 = vmul.f32 %v639, %v825
        %v890 = vmul.f32 %v750, %v826
        %v891 = vmul.f32 %v752, %v827
        %v892 = vmul.f32 %v641, %v828
        %v893 = vmul.f32 %v643, %v829
        %v894 = vmul.f32 %v754, %v830
        %v895 = vmul.f32 %v756, %v831
        %v896 = vmul.f32 %v647, %v832
        %v897 = vmul.f32 %v649, %v833
        %v898 = vmul.f32 %v760, %v834
        %v899 = vmul.f32 %v762, %v835
        %v900 = vmul.f32 %v651, %v836
        %v901 = vmul.f32 %v653, %v837
        %v902 = vmul.f32 %v764, %v838
        %v903 = vmul.f32 %v766, %v839
        %v904 = vmul.f32 %v657, %v840
        %v905 = vmul.f32 %v659, %v841
        %v906 = vmul.f32 %v770, %v842
        %v907 = vmul.f32 %v772, %v843
        %v908 = vmul.f32 %v661, %v844
        %v909 = vmul.f32 %v663, %v845
        %v910 = vmul.f32 %v774, %v846
        %v911 = vmul.f32 %v776, %v847
        %v912 = vmul.f32 %v667, %v848
        %v913 = vmul.f32 %v669, %v849
        %v914 = vmul.f32 %v780, %v850
        %v915 = vmul.f32 %v782, %v851
        %v916 = vmul.f32 %v671, %v852
        %v917 = vmul.f32 %v673, %v853
        %v918 = vmul.f32 %v784, %v854
        %v919 = vmul.f32 %v786, %v855
        %v920 = vmul.f32 %v677, %v856
        %v921 = vmul.f32 %v679, %v857
        %v922 = vmul.f32 %v790, %v858
        %v923 = vmul.f32 %v792, %v859
        %v924 = vmul.f32 %v681, %v860
        %v925 = vmul.f32 %v683, %v861
        %v926 = vmul.f32 %v794, %v862
        %v927 = vmul.f32 %v796, %v863
        %v928 = vmul.f32 %v687, %v864
        %v929 = vmul.f32 %v689, %v865
        %v930 = vmul.f32 %v800, %v866
        %v931 = vmul.f32 %v802, %v867
        %v932 = vmul.f32 %v691, %v868
        %v933 = vmul.f32 %v693, %v869
        %v934 = vmul.f32 %v804, %v870
        %v935 = vmul.f32 %v806, %v871
        %v936 = vmul.f32 %v872, 0.044715
        %v937 = vmul.f32 %v873, 0.044715
        %v938 = vmul.f32 %v874, 0.044715
        %v939 = vmul.f32 %v875, 0.044715
        %v940 = vmul.f32 %v876, 0.044715
        %v941 = vmul.f32 %v877, 0.044715
        %v942 = vmul.f32 %v878, 0.044715
        %v943 = vmul.f32 %v879, 0.044715
        %v944 = vmul.f32 %v880, 0.044715
        %v945 = vmul.f32 %v881, 0.044715
        %v946 = vmul.f32 %v882, 0.044715
        %v947 = vmul.f32 %v883, 0.044715
        %v948 = vmul.f32 %v884, 0.044715
        %v949 = vmul.f32 %v885, 0.044715
        %v950 = vmul.f32 %v886, 0.044715
        %v951 = vmul.f32 %v887, 0.044715
        %v952 = vmul.f32 %v888, 0.044715
        %v953 = vmul.f32 %v889, 0.044715
        %v954 = vmul.f32 %v890, 0.044715
        %v955 = vmul.f32 %v891, 0.044715
        %v956 = vmul.f32 %v892, 0.044715
        %v957 = vmul.f32 %v893, 0.044715
        %v958 = vmul.f32 %v894, 0.044715
        %v959 = vmul.f32 %v895, 0.044715
        %v960 = vmul.f32 %v896, 0.044715
        %v961 = vmul.f32 %v897, 0.044715
        %v962 = vmul.f32 %v898, 0.044715
        %v963 = vmul.f32 %v899, 0.044715
        %v964 = vmul.f32 %v900, 0.044715
        %v965 = vmul.f32 %v901, 0.044715
        %v966 = vmul.f32 %v902, 0.044715
        %v967 = vmul.f32 %v903, 0.044715
        %v968 = vmul.f32 %v904, 0.044715
        %v969 = vmul.f32 %v905, 0.044715
        %v970 = vmul.f32 %v906, 0.044715
        %v971 = vmul.f32 %v907, 0.044715
        %v972 = vmul.f32 %v908, 0.044715
        %v973 = vmul.f32 %v909, 0.044715
        %v974 = vmul.f32 %v910, 0.044715
        %v975 = vmul.f32 %v911, 0.044715
        %v976 = vmul.f32 %v912, 0.044715
        %v977 = vmul.f32 %v913, 0.044715
        %v978 = vmul.f32 %v914, 0.044715
        %v979 = vmul.f32 %v915, 0.044715
        %v980 = vmul.f32 %v916, 0.044715
        %v981 = vmul.f32 %v917, 0.044715
        %v982 = vmul.f32 %v918, 0.044715
        %v983 = vmul.f32 %v919, 0.044715
        %v984 = vmul.f32 %v920, 0.044715
        %v985 = vmul.f32 %v921, 0.044715
        %v986 = vmul.f32 %v922, 0.044715
        %v987 = vmul.f32 %v923, 0.044715
        %v988 = vmul.f32 %v924, 0.044715
        %v989 = vmul.f32 %v925, 0.044715
        %v990 = vmul.f32 %v926, 0.044715
        %v991 = vmul.f32 %v927, 0.044715
        %v992 = vmul.f32 %v928, 0.044715
        %v993 = vmul.f32 %v929, 0.044715
        %v994 = vmul.f32 %v930, 0.044715
        %v995 = vmul.f32 %v931, 0.044715
        %v996 = vmul.f32 %v932, 0.044715
        %v997 = vmul.f32 %v933, 0.044715
        %v998 = vmul.f32 %v934, 0.044715
        %v999 = vmul.f32 %v935, 0.044715
        %v1000 = vadd.f32 %v617, %v936
        %v1001 = vadd.f32 %v619, %v937
        %v1002 = vadd.f32 %v730, %v938
        %v1003 = vadd.f32 %v732, %v939
        %v1004 = vadd.f32 %v621, %v940
        %v1005 = vadd.f32 %v623, %v941
        %v1006 = vadd.f32 %v734, %v942
        %v1007 = vadd.f32 %v736, %v943
        %v1008 = vadd.f32 %v627, %v944
        %v1009 = vadd.f32 %v629, %v945
        %v1010 = vadd.f32 %v740, %v946
        %v1011 = vadd.f32 %v742, %v947
        %v1012 = vadd.f32 %v631, %v948
        %v1013 = vadd.f32 %v633, %v949
        %v1014 = vadd.f32 %v744, %v950
        %v1015 = vadd.f32 %v746, %v951
        %v1016 = vadd.f32 %v637, %v952
        %v1017 = vadd.f32 %v639, %v953
        %v1018 = vadd.f32 %v750, %v954
        %v1019 = vadd.f32 %v752, %v955
        %v1020 = vadd.f32 %v641, %v956
        %v1021 = vadd.f32 %v643, %v957
        %v1022 = vadd.f32 %v754, %v958
        %v1023 = vadd.f32 %v756, %v959
        %v1024 = vadd.f32 %v647, %v960
        %v1025 = vadd.f32 %v649, %v961
        %v1026 = vadd.f32 %v760, %v962
        %v1027 = vadd.f32 %v762, %v963
        %v1028 = vadd.f32 %v651, %v964
        %v1029 = vadd.f32 %v653, %v965
        %v1030 = vadd.f32 %v764, %v966
        %v1031 = vadd.f32 %v766, %v967
        %v1032 = vadd.f32 %v657, %v968
        %v1033 = vadd.f32 %v659, %v969
        %v1034 = vadd.f32 %v770, %v970
        %v1035 = vadd.f32 %v772, %v971
        %v1036 = vadd.f32 %v661, %v972
        %v1037 = vadd.f32 %v663, %v973
        %v1038 = vadd.f32 %v774, %v974
        %v1039 = vadd.f32 %v776, %v975
        %v1040 = vadd.f32 %v667, %v976
        %v1041 = vadd.f32 %v669, %v977
        %v1042 = vadd.f32 %v780, %v978
        %v1043 = vadd.f32 %v782, %v979
        %v1044 = vadd.f32 %v671, %v980
        %v1045 = vadd.f32 %v673, %v981
        %v1046 = vadd.f32 %v784, %v982
        %v1047 = vadd.f32 %v786, %v983
        %v1048 = vadd.f32 %v677, %v984
        %v1049 = vadd.f32 %v679, %v985
        %v1050 = vadd.f32 %v790, %v986
        %v1051 = vadd.f32 %v792, %v987
        %v1052 = vadd.f32 %v681, %v988
        %v1053 = vadd.f32 %v683, %v989
        %v1054 = vadd.f32 %v794, %v990
        %v1055 = vadd.f32 %v796, %v991
        %v1056 = vadd.f32 %v687, %v992
        %v1057 = vadd.f32 %v689, %v993
        %v1058 = vadd.f32 %v800, %v994
        %v1059 = vadd.f32 %v802, %v995
        %v1060 = vadd.f32 %v691, %v996
        %v1061 = vadd.f32 %v693, %v997
        %v1062 = vadd.f32 %v804, %v998
        %v1063 = vadd.f32 %v806, %v999
        %v1064 = vmul.f32 %v1000, 0.7978846
        %v1065 = vmul.f32 %v1001, 0.7978846
        %v1066 = vmul.f32 %v1002, 0.7978846
        %v1067 = vmul.f32 %v1003, 0.7978846
        %v1068 = vmul.f32 %v1004, 0.7978846
        %v1069 = vmul.f32 %v1005, 0.7978846
        %v1070 = vmul.f32 %v1006, 0.7978846
        %v1071 = vmul.f32 %v1007, 0.7978846
        %v1072 = vmul.f32 %v1008, 0.7978846
        %v1073 = vmul.f32 %v1009, 0.7978846
        %v1074 = vmul.f32 %v1010, 0.7978846
        %v1075 = vmul.f32 %v1011, 0.7978846
        %v1076 = vmul.f32 %v1012, 0.7978846
        %v1077 = vmul.f32 %v1013, 0.7978846
        %v1078 = vmul.f32 %v1014, 0.7978846
        %v1079 = vmul.f32 %v1015, 0.7978846
        %v1080 = vmul.f32 %v1016, 0.7978846
        %v1081 = vmul.f32 %v1017, 0.7978846
        %v1082 = vmul.f32 %v1018, 0.7978846
        %v1083 = vmul.f32 %v1019, 0.7978846
        %v1084 = vmul.f32 %v1020, 0.7978846
        %v1085 = vmul.f32 %v1021, 0.7978846
        %v1086 = vmul.f32 %v1022, 0.7978846
        %v1087 = vmul.f32 %v1023, 0.7978846
        %v1088 = vmul.f32 %v1024, 0.7978846
        %v1089 = vmul.f32 %v1025, 0.7978846
        %v1090 = vmul.f32 %v1026, 0.7978846
        %v1091 = vmul.f32 %v1027, 0.7978846
        %v1092 = vmul.f32 %v1028, 0.7978846
        %v1093 = vmul.f32 %v1029, 0.7978846
        %v1094 = vmul.f32 %v1030, 0.7978846
        %v1095 = vmul.f32 %v1031, 0.7978846
        %v1096 = vmul.f32 %v1032, 0.7978846
        %v1097 = vmul.f32 %v1033, 0.7978846
        %v1098 = vmul.f32 %v1034, 0.7978846
        %v1099 = vmul.f32 %v1035, 0.7978846
        %v1100 = vmul.f32 %v1036, 0.7978846
        %v1101 = vmul.f32 %v1037, 0.7978846
        %v1102 = vmul.f32 %v1038, 0.7978846
        %v1103 = vmul.f32 %v1039, 0.7978846
        %v1104 = vmul.f32 %v1040, 0.7978846
        %v1105 = vmul.f32 %v1041, 0.7978846
        %v1106 = vmul.f32 %v1042, 0.7978846
        %v1107 = vmul.f32 %v1043, 0.7978846
        %v1108 = vmul.f32 %v1044, 0.7978846
        %v1109 = vmul.f32 %v1045, 0.7978846
        %v1110 = vmul.f32 %v1046, 0.7978846
        %v1111 = vmul.f32 %v1047, 0.7978846
        %v1112 = vmul.f32 %v1048, 0.7978846
        %v1113 = vmul.f32 %v1049, 0.7978846
        %v1114 = vmul.f32 %v1050, 0.7978846
        %v1115 = vmul.f32 %v1051, 0.7978846
        %v1116 = vmul.f32 %v1052, 0.7978846
        %v1117 = vmul.f32 %v1053, 0.7978846
        %v1118 = vmul.f32 %v1054, 0.7978846
        %v1119 = vmul.f32 %v1055, 0.7978846
        %v1120 = vmul.f32 %v1056, 0.7978846
        %v1121 = vmul.f32 %v1057, 0.7978846
        %v1122 = vmul.f32 %v1058, 0.7978846
        %v1123 = vmul.f32 %v1059, 0.7978846
        %v1124 = vmul.f32 %v1060, 0.7978846
        %v1125 = vmul.f32 %v1061, 0.7978846
        %v1126 = vmul.f32 %v1062, 0.7978846
        %v1127 = vmul.f32 %v1063, 0.7978846
        %v1128 = vtanh.pop %v1064
        %v1129 = vtanh.pop %v1065
        %v1130 = vtanh.pop %v1066
        %v1131 = vtanh.pop %v1067
        %v1132 = vtanh.pop %v1068
        %v1133 = vtanh.pop %v1069
        %v1134 = vtanh.pop %v1070
        %v1135 = vtanh.pop %v1071
        %v1136 = vtanh.pop %v1072
        %v1137 = vtanh.pop %v1073
        %v1138 = vtanh.pop %v1074
        %v1139 = vtanh.pop %v1075
        %v1140 = vtanh.pop %v1076
        %v1141 = vtanh.pop %v1077
        %v1142 = vtanh.pop %v1078
        %v1143 = vtanh.pop %v1079
        %v1144 = vtanh.pop %v1080
        %v1145 = vtanh.pop %v1081
        %v1146 = vtanh.pop %v1082
        %v1147 = vtanh.pop %v1083
        %v1148 = vtanh.pop %v1084
        %v1149 = vtanh.pop %v1085
        %v1150 = vtanh.pop %v1086
        %v1151 = vtanh.pop %v1087
        %v1152 = vtanh.pop %v1088
        %v1153 = vtanh.pop %v1089
        %v1154 = vtanh.pop %v1090
        %v1155 = vtanh.pop %v1091
        %v1156 = vtanh.pop %v1092
        %v1157 = vtanh.pop %v1093
        %v1158 = vtanh.pop %v1094
        %v1159 = vtanh.pop %v1095
        %v1160 = vtanh.pop %v1096
        %v1161 = vtanh.pop %v1097
        %v1162 = vtanh.pop %v1098
        %v1163 = vtanh.pop %v1099
        %v1164 = vtanh.pop %v1100
        %v1165 = vtanh.pop %v1101
        %v1166 = vtanh.pop %v1102
        %v1167 = vtanh.pop %v1103
        %v1168 = vtanh.pop %v1104
        %v1169 = vtanh.pop %v1105
        %v1170 = vtanh.pop %v1106
        %v1171 = vtanh.pop %v1107
        %v1172 = vtanh.pop %v1108
        %v1173 = vtanh.pop %v1109
        %v1174 = vtanh.pop %v1110
        %v1175 = vtanh.pop %v1111
        %v1176 = vtanh.pop %v1112
        %v1177 = vtanh.pop %v1113
        %v1178 = vtanh.pop %v1114
        %v1179 = vtanh.pop %v1115
        %v1180 = vtanh.pop %v1116
        %v1181 = vtanh.pop %v1117
        %v1182 = vtanh.pop %v1118
        %v1183 = vtanh.pop %v1119
        %v1184 = vtanh.pop %v1120
        %v1185 = vtanh.pop %v1121
        %v1186 = vtanh.pop %v1122
        %v1187 = vtanh.pop %v1123
        %v1188 = vtanh.pop %v1124
        %v1189 = vtanh.pop %v1125
        %v1190 = vtanh.pop %v1126
        %v1191 = vtanh.pop %v1127
        %v1192 = vadd.f32 %v1128, 1.0
        %v1193 = vadd.f32 %v1129, 1.0
        %v1194 = vadd.f32 %v1130, 1.0
        %v1195 = vadd.f32 %v1131, 1.0
        %v1196 = vadd.f32 %v1132, 1.0
        %v1197 = vadd.f32 %v1133, 1.0
        %v1198 = vadd.f32 %v1134, 1.0
        %v1199 = vadd.f32 %v1135, 1.0
        %v1200 = vadd.f32 %v1136, 1.0
        %v1201 = vadd.f32 %v1137, 1.0
        %v1202 = vadd.f32 %v1138, 1.0
        %v1203 = vadd.f32 %v1139, 1.0
        %v1204 = vadd.f32 %v1140, 1.0
        %v1205 = vadd.f32 %v1141, 1.0
        %v1206 = vadd.f32 %v1142, 1.0
        %v1207 = vadd.f32 %v1143, 1.0
        %v1208 = vadd.f32 %v1144, 1.0
        %v1209 = vadd.f32 %v1145, 1.0
        %v1210 = vadd.f32 %v1146, 1.0
        %v1211 = vadd.f32 %v1147, 1.0
        %v1212 = vadd.f32 %v1148, 1.0
        %v1213 = vadd.f32 %v1149, 1.0
        %v1214 = vadd.f32 %v1150, 1.0
        %v1215 = vadd.f32 %v1151, 1.0
        %v1216 = vadd.f32 %v1152, 1.0
        %v1217 = vadd.f32 %v1153, 1.0
        %v1218 = vadd.f32 %v1154, 1.0
        %v1219 = vadd.f32 %v1155, 1.0
        %v1220 = vadd.f32 %v1156, 1.0
        %v1221 = vadd.f32 %v1157, 1.0
        %v1222 = vadd.f32 %v1158, 1.0
        %v1223 = vadd.f32 %v1159, 1.0
        %v1224 = vadd.f32 %v1160, 1.0
        %v1225 = vadd.f32 %v1161, 1.0
        %v1226 = vadd.f32 %v1162, 1.0
        %v1227 = vadd.f32 %v1163, 1.0
        %v1228 = vadd.f32 %v1164, 1.0
        %v1229 = vadd.f32 %v1165, 1.0
        %v1230 = vadd.f32 %v1166, 1.0
        %v1231 = vadd.f32 %v1167, 1.0
        %v1232 = vadd.f32 %v1168, 1.0
        %v1233 = vadd.f32 %v1169, 1.0
        %v1234 = vadd.f32 %v1170, 1.0
        %v1235 = vadd.f32 %v1171, 1.0
        %v1236 = vadd.f32 %v1172, 1.0
        %v1237 = vadd.f32 %v1173, 1.0
        %v1238 = vadd.f32 %v1174, 1.0
        %v1239 = vadd.f32 %v1175, 1.0
        %v1240 = vadd.f32 %v1176, 1.0
        %v1241 = vadd.f32 %v1177, 1.0
        %v1242 = vadd.f32 %v1178, 1.0
        %v1243 = vadd.f32 %v1179, 1.0
        %v1244 = vadd.f32 %v1180, 1.0
        %v1245 = vadd.f32 %v1181, 1.0
        %v1246 = vadd.f32 %v1182, 1.0
        %v1247 = vadd.f32 %v1183, 1.0
        %v1248 = vadd.f32 %v1184, 1.0
        %v1249 = vadd.f32 %v1185, 1.0
        %v1250 = vadd.f32 %v1186, 1.0
        %v1251 = vadd.f32 %v1187, 1.0
        %v1252 = vadd.f32 %v1188, 1.0
        %v1253 = vadd.f32 %v1189, 1.0
        %v1254 = vadd.f32 %v1190, 1.0
        %v1255 = vadd.f32 %v1191, 1.0
        %v1256 = vmul.f32 %v1192, 0.5
        %v1257 = vmul.f32 %v1193, 0.5
        %v1258 = vmul.f32 %v1194, 0.5
        %v1259 = vmul.f32 %v1195, 0.5
        %v1260 = vmul.f32 %v1196, 0.5
        %v1261 = vmul.f32 %v1197, 0.5
        %v1262 = vmul.f32 %v1198, 0.5
        %v1263 = vmul.f32 %v1199, 0.5
        %v1264 = vmul.f32 %v1200, 0.5
        %v1265 = vmul.f32 %v1201, 0.5
        %v1266 = vmul.f32 %v1202, 0.5
        %v1267 = vmul.f32 %v1203, 0.5
        %v1268 = vmul.f32 %v1204, 0.5
        %v1269 = vmul.f32 %v1205, 0.5
        %v1270 = vmul.f32 %v1206, 0.5
        %v1271 = vmul.f32 %v1207, 0.5
        %v1272 = vmul.f32 %v1208, 0.5
        %v1273 = vmul.f32 %v1209, 0.5
        %v1274 = vmul.f32 %v1210, 0.5
        %v1275 = vmul.f32 %v1211, 0.5
        %v1276 = vmul.f32 %v1212, 0.5
        %v1277 = vmul.f32 %v1213, 0.5
        %v1278 = vmul.f32 %v1214, 0.5
        %v1279 = vmul.f32 %v1215, 0.5
        %v1280 = vmul.f32 %v1216, 0.5
        %v1281 = vmul.f32 %v1217, 0.5
        %v1282 = vmul.f32 %v1218, 0.5
        %v1283 = vmul.f32 %v1219, 0.5
        %v1284 = vmul.f32 %v1220, 0.5
        %v1285 = vmul.f32 %v1221, 0.5
        %v1286 = vmul.f32 %v1222, 0.5
        %v1287 = vmul.f32 %v1223, 0.5
        %v1288 = vmul.f32 %v1224, 0.5
        %v1289 = vmul.f32 %v1225, 0.5
        %v1290 = vmul.f32 %v1226, 0.5
        %v1291 = vmul.f32 %v1227, 0.5
        %v1292 = vmul.f32 %v1228, 0.5
        %v1293 = vmul.f32 %v1229, 0.5
        %v1294 = vmul.f32 %v1230, 0.5
        %v1295 = vmul.f32 %v1231, 0.5
        %v1296 = vmul.f32 %v1232, 0.5
        %v1297 = vmul.f32 %v1233, 0.5
        %v1298 = vmul.f32 %v1234, 0.5
        %v1299 = vmul.f32 %v1235, 0.5
        %v1300 = vmul.f32 %v1236, 0.5
        %v1301 = vmul.f32 %v1237, 0.5
        %v1302 = vmul.f32 %v1238, 0.5
        %v1303 = vmul.f32 %v1239, 0.5
        %v1304 = vmul.f32 %v1240, 0.5
        %v1305 = vmul.f32 %v1241, 0.5
        %v1306 = vmul.f32 %v1242, 0.5
        %v1307 = vmul.f32 %v1243, 0.5
        %v1308 = vmul.f32 %v1244, 0.5
        %v1309 = vmul.f32 %v1245, 0.5
        %v1310 = vmul.f32 %v1246, 0.5
        %v1311 = vmul.f32 %v1247, 0.5
        %v1312 = vmul.f32 %v1248, 0.5
        %v1313 = vmul.f32 %v1249, 0.5
        %v1314 = vmul.f32 %v1250, 0.5
        %v1315 = vmul.f32 %v1251, 0.5
        %v1316 = vmul.f32 %v1252, 0.5
        %v1317 = vmul.f32 %v1253, 0.5
        %v1318 = vmul.f32 %v1254, 0.5
        %v1319 = vmul.f32 %v1255, 0.5
        %v1320 = vmul.f32 %v617, %v1256
        %v1321 = vmul.f32 %v619, %v1257
        %v1322 = vmul.f32 %v730, %v1258
        %v1323 = vmul.f32 %v732, %v1259
        %v1324 = vmul.f32 %v621, %v1260
        %v1325 = vmul.f32 %v623, %v1261
        %v1326 = vmul.f32 %v734, %v1262
        %v1327 = vmul.f32 %v736, %v1263
        %v1328 = vmul.f32 %v627, %v1264
        %v1329 = vmul.f32 %v629, %v1265
        %v1330 = vmul.f32 %v740, %v1266
        %v1331 = vmul.f32 %v742, %v1267
        %v1332 = vmul.f32 %v631, %v1268
        %v1333 = vmul.f32 %v633, %v1269
        %v1334 = vmul.f32 %v744, %v1270
        %v1335 = vmul.f32 %v746, %v1271
        %v1336 = vmul.f32 %v637, %v1272
        %v1337 = vmul.f32 %v639, %v1273
        %v1338 = vmul.f32 %v750, %v1274
        %v1339 = vmul.f32 %v752, %v1275
        %v1340 = vmul.f32 %v641, %v1276
        %v1341 = vmul.f32 %v643, %v1277
        %v1342 = vmul.f32 %v754, %v1278
        %v1343 = vmul.f32 %v756, %v1279
        %v1344 = vmul.f32 %v647, %v1280
        %v1345 = vmul.f32 %v649, %v1281
        %v1346 = vmul.f32 %v760, %v1282
        %v1347 = vmul.f32 %v762, %v1283
        %v1348 = vmul.f32 %v651, %v1284
        %v1349 = vmul.f32 %v653, %v1285
        %v1350 = vmul.f32 %v764, %v1286
        %v1351 = vmul.f32 %v766, %v1287
        %v1352 = vmul.f32 %v657, %v1288
        %v1353 = vmul.f32 %v659, %v1289
        %v1354 = vmul.f32 %v770, %v1290
        %v1355 = vmul.f32 %v772, %v1291
        %v1356 = vmul.f32 %v661, %v1292
        %v1357 = vmul.f32 %v663, %v1293
        %v1358 = vmul.f32 %v774, %v1294
        %v1359 = vmul.f32 %v776, %v1295
        %v1360 = vmul.f32 %v667, %v1296
        %v1361 = vmul.f32 %v669, %v1297
        %v1362 = vmul.f32 %v780, %v1298
        %v1363 = vmul.f32 %v782, %v1299
        %v1364 = vmul.f32 %v671, %v1300
        %v1365 = vmul.f32 %v673, %v1301
        %v1366 = vmul.f32 %v784, %v1302
        %v1367 = vmul.f32 %v786, %v1303
        %v1368 = vmul.f32 %v677, %v1304
        %v1369 = vmul.f32 %v679, %v1305
        %v1370 = vmul.f32 %v790, %v1306
        %v1371 = vmul.f32 %v792, %v1307
        %v1372 = vmul.f32 %v681, %v1308
        %v1373 = vmul.f32 %v683, %v1309
        %v1374 = vmul.f32 %v794, %v1310
        %v1375 = vmul.f32 %v796, %v1311
        %v1376 = vmul.f32 %v687, %v1312
        %v1377 = vmul.f32 %v689, %v1313
        %v1378 = vmul.f32 %v800, %v1314
        %v1379 = vmul.f32 %v802, %v1315
        %v1380 = vmul.f32 %v691, %v1316
        %v1381 = vmul.f32 %v693, %v1317
        %v1382 = vmul.f32 %v804, %v1318
        %v1383 = vmul.f32 %v806, %v1319
        %v1384 = vld [vmem:[#allocation2] sm:$0xff]
        %v1385 = vld [vmem:[#allocation2 + $0x8] sm:$0xff]
        %v1386 = vld [vmem:[#allocation2 + $0x10] sm:$0xff]
        %v1387 = vld [vmem:[#allocation2 + $0x18] sm:$0xff]
        %v1388 = vld [vmem:[#allocation2 + $0x20] sm:$0xff]
        %v1389 = vld [vmem:[#allocation2 + $0x28] sm:$0xff]
        %v1390 = vld [vmem:[#allocation2 + $0x30] sm:$0xff]
        %v1391 = vld [vmem:[#allocation2 + $0x38] sm:$0xff]
        %v1392 = vld [vmem:[#allocation2 + $0x40] sm:$0xff]
        %v1393 = vld [vmem:[#allocation2 + $0x48] sm:$0xff]
        %v1394 = vld [vmem:[#allocation2 + $0x50] sm:$0xff]
        %v1395 = vld [vmem:[#allocation2 + $0x58] sm:$0xff]
        %v1396 = vld [vmem:[#allocation2 + $0x60] sm:$0xff]
        %v1397 = vld [vmem:[#allocation2 + $0x68] sm:$0xff]
        %v1398 = vld [vmem:[#allocation2 + $0x70] sm:$0xff]
        %v1399 = vld [vmem:[#allocation2 + $0x78] sm:$0xff]
        %v1400 = vpack.c.bf16 %v1324, %v1320
        %v1401 = vpack.c.bf16 %v1325, %v1321
        %v1402 = vpack.c.bf16 %v1326, %v1322
        %v1403 = vpack.c.bf16 %v1327, %v1323
        %v1404 = vpack.c.bf16 %v1332, %v1328
        %v1405 = vpack.c.bf16 %v1333, %v1329
        %v1406 = vpack.c.bf16 %v1334, %v1330
        %v1407 = vpack.c.bf16 %v1335, %v1331
        %v1408 = vpack.c.bf16 %v1340, %v1336
        %v1409 = vpack.c.bf16 %v1341, %v1337
        %v1410 = vpack.c.bf16 %v1342, %v1338
        %v1411 = vpack.c.bf16 %v1343, %v1339
        %v1412 = vpack.c.bf16 %v1348, %v1344
        %v1413 = vpack.c.bf16 %v1349, %v1345
        %v1414 = vpack.c.bf16 %v1350, %v1346
        %v1415 = vpack.c.bf16 %v1351, %v1347
        %v1416 = vpack.c.bf16 %v1356, %v1352
        %v1417 = vpack.c.bf16 %v1357, %v1353
        %v1418 = vpack.c.bf16 %v1358, %v1354
        %v1419 = vpack.c.bf16 %v1359, %v1355
        %v1420 = vpack.c.bf16 %v1364, %v1360
        %v1421 = vpack.c.bf16 %v1365, %v1361
        %v1422 = vpack.c.bf16 %v1366, %v1362
        %v1423 = vpack.c.bf16 %v1367, %v1363
        %v1424 = vpack.c.bf16 %v1372, %v1368
        %v1425 = vpack.c.bf16 %v1373, %v1369
        %v1426 = vpack.c.bf16 %v1374, %v1370
        %v1427 = vpack.c.bf16 %v1375, %v1371
        %v1428 = vpack.c.bf16 %v1380, %v1376
        %v1429 = vpack.c.bf16 %v1381, %v1377
        %v1430 = vpack.c.bf16 %v1382, %v1378
        %v1431 = vpack.c.bf16 %v1383, %v1379
        %v1432 = vld [vmem:[#allocation8] sm:$0xf]
        %v1433 = vld [vmem:[#allocation8 + $0x4] sm:$0xf]
        %v1434 = vld [vmem:[#allocation8 + $0x8] sm:$0xf]
        %v1435 = vld [vmem:[#allocation8 + $0xc] sm:$0xf]
        %v1436 = vld [vmem:[#allocation8 + $0x10] sm:$0xf]
        %v1437 = vld [vmem:[#allocation8 + $0x14] sm:$0xf]
        %v1438 = vld [vmem:[#allocation8 + $0x18] sm:$0xf]
        %v1439 = vld [vmem:[#allocation8 + $0x1c] sm:$0xf]
        %v1440 = vld [vmem:[#allocation8 + $0x20] sm:$0xf]
        %v1441 = vld [vmem:[#allocation8 + $0x24] sm:$0xf]
        %v1442 = vld [vmem:[#allocation8 + $0x28] sm:$0xf]
        %v1443 = vld [vmem:[#allocation8 + $0x2c] sm:$0xf]
        %v1444 = vld [vmem:[#allocation8 + $0x30] sm:$0xf]
        %v1445 = vld [vmem:[#allocation8 + $0x34] sm:$0xf]
        %v1446 = vld [vmem:[#allocation8 + $0x38] sm:$0xf]
        %v1447 = vld [vmem:[#allocation8 + $0x3c] sm:$0xf]
        %v1448 = vld [vmem:[#allocation8 + $0x40] sm:$0xf]
        %v1449 = vld [vmem:[#allocation8 + $0x44] sm:$0xf]
        %v1450 = vld [vmem:[#allocation8 + $0x48] sm:$0xf]
        %v1451 = vld [vmem:[#allocation8 + $0x4c] sm:$0xf]
        %v1452 = vld [vmem:[#allocation8 + $0x50] sm:$0xf]
        %v1453 = vld [vmem:[#allocation8 + $0x54] sm:$0xf]
        %v1454 = vld [vmem:[#allocation8 + $0x58] sm:$0xf]
        %v1455 = vld [vmem:[#allocation8 + $0x5c] sm:$0xf]
        %v1456 = vld [vmem:[#allocation8 + $0x60] sm:$0xf]
        %v1457 = vld [vmem:[#allocation8 + $0x64] sm:$0xf]
        %v1458 = vld [vmem:[#allocation8 + $0x68] sm:$0xf]
        %v1459 = vld [vmem:[#allocation8 + $0x6c] sm:$0xf]
        %v1460 = vld [vmem:[#allocation8 + $0x70] sm:$0xf]
        %v1461 = vld [vmem:[#allocation8 + $0x74] sm:$0xf]
        %v1462 = vld [vmem:[#allocation8 + $0x78] sm:$0xf]
        %v1463 = vld [vmem:[#allocation8 + $0x7c] sm:$0xf]
        %v1464 = vld [vmem:[#allocation8 + $0x80] sm:$0xf]
        %v1465 = vld [vmem:[#allocation8 + $0x84] sm:$0xf]
        %v1466 = vld [vmem:[#allocation8 + $0x88] sm:$0xf]
        %v1467 = vld [vmem:[#allocation8 + $0x8c] sm:$0xf]
        %v1468 = vld [vmem:[#allocation8 + $0x90] sm:$0xf]
        %v1469 = vld [vmem:[#allocation8 + $0x94] sm:$0xf]
        %v1470 = vld [vmem:[#allocation8 + $0x98] sm:$0xf]
        %v1471 = vld [vmem:[#allocation8 + $0x9c] sm:$0xf]
        %v1472 = vld [vmem:[#allocation8 + $0xa0] sm:$0xf]
        %v1473 = vld [vmem:[#allocation8 + $0xa4] sm:$0xf]
        %v1474 = vld [vmem:[#allocation8 + $0xa8] sm:$0xf]
        %v1475 = vld [vmem:[#allocation8 + $0xac] sm:$0xf]
        %v1476 = vld [vmem:[#allocation8 + $0xb0] sm:$0xf]
        %v1477 = vld [vmem:[#allocation8 + $0xb4] sm:$0xf]
        %v1478 = vld [vmem:[#allocation8 + $0xb8] sm:$0xf]
        %v1479 = vld [vmem:[#allocation8 + $0xbc] sm:$0xf]
        %v1480 = vld [vmem:[#allocation8 + $0xc0] sm:$0xf]
        %v1481 = vld [vmem:[#allocation8 + $0xc4] sm:$0xf]
        %v1482 = vld [vmem:[#allocation8 + $0xc8] sm:$0xf]
        %v1483 = vld [vmem:[#allocation8 + $0xcc] sm:$0xf]
        %v1484 = vld [vmem:[#allocation8 + $0xd0] sm:$0xf]
        %v1485 = vld [vmem:[#allocation8 + $0xd4] sm:$0xf]
        %v1486 = vld [vmem:[#allocation8 + $0xd8] sm:$0xf]
        %v1487 = vld [vmem:[#allocation8 + $0xdc] sm:$0xf]
        %v1488 = vld [vmem:[#allocation8 + $0xe0] sm:$0xf]
        %v1489 = vld [vmem:[#allocation8 + $0xe4] sm:$0xf]
        %v1490 = vld [vmem:[#allocation8 + $0xe8] sm:$0xf]
        %v1491 = vld [vmem:[#allocation8 + $0xec] sm:$0xf]
        %v1492 = vld [vmem:[#allocation8 + $0xf0] sm:$0xf]
        %v1493 = vld [vmem:[#allocation8 + $0xf4] sm:$0xf]
        %v1494 = vld [vmem:[#allocation8 + $0xf8] sm:$0xf]
        %v1495 = vld [vmem:[#allocation8 + $0xfc] sm:$0xf]
        %v1560 = vunpack.c.l.b16 %v1432
        %v1561 = vunpack.c.l.b16 %v1433
        %v1562 = vunpack.c.l.b16 %v1434
        %v1563 = vunpack.c.l.b16 %v1435
        %v1564 = vunpack.c.l.b16 %v1436
        %v1565 = vunpack.c.l.b16 %v1437
        %v1566 = vunpack.c.l.b16 %v1438
        %v1567 = vunpack.c.l.b16 %v1439
        %v1568 = vunpack.c.l.b16 %v1440
        %v1569 = vunpack.c.l.b16 %v1441
        %v1570 = vunpack.c.l.b16 %v1442
        %v1571 = vunpack.c.l.b16 %v1443
        %v1572 = vunpack.c.l.b16 %v1444
        %v1573 = vunpack.c.l.b16 %v1445
        %v1574 = vunpack.c.l.b16 %v1446
        %v1575 = vunpack.c.l.b16 %v1447
        %v1576 = vunpack.c.l.b16 %v1448
        %v1577 = vunpack.c.l.b16 %v1449
        %v1578 = vunpack.c.l.b16 %v1450
        %v1579 = vunpack.c.l.b16 %v1451
        %v1580 = vunpack.c.l.b16 %v1452
        %v1581 = vunpack.c.l.b16 %v1453
        %v1582 = vunpack.c.l.b16 %v1454
        %v1583 = vunpack.c.l.b16 %v1455
        %v1584 = vunpack.c.l.b16 %v1456
        %v1585 = vunpack.c.l.b16 %v1457
        %v1586 = vunpack.c.l.b16 %v1458
        %v1587 = vunpack.c.l.b16 %v1459
        %v1588 = vunpack.c.l.b16 %v1460
        %v1589 = vunpack.c.l.b16 %v1461
        %v1590 = vunpack.c.l.b16 %v1462
        %v1591 = vunpack.c.l.b16 %v1463
        %v1592 = vunpack.c.l.b16 %v1464
        %v1593 = vunpack.c.l.b16 %v1465
        %v1594 = vunpack.c.l.b16 %v1466
        %v1595 = vunpack.c.l.b16 %v1467
        %v1596 = vunpack.c.l.b16 %v1468
        %v1597 = vunpack.c.l.b16 %v1469
        %v1598 = vunpack.c.l.b16 %v1470
        %v1599 = vunpack.c.l.b16 %v1471
        %v1600 = vunpack.c.l.b16 %v1472
        %v1601 = vunpack.c.l.b16 %v1473
        %v1602 = vunpack.c.l.b16 %v1474
        %v1603 = vunpack.c.l.b16 %v1475
        %v1604 = vunpack.c.l.b16 %v1476
        %v1605 = vunpack.c.l.b16 %v1477
        %v1606 = vunpack.c.l.b16 %v1478
        %v1607 = vunpack.c.l.b16 %v1479
        %v1608 = vunpack.c.l.b16 %v1480
        %v1609 = vunpack.c.l.b16 %v1481
        %v1610 = vunpack.c.l.b16 %v1482
        %v1611 = vunpack.c.l.b16 %v1483
        %v1612 = vunpack.c.l.b16 %v1484
        %v1613 = vunpack.c.l.b16 %v1485
        %v1614 = vunpack.c.l.b16 %v1486
        %v1615 = vunpack.c.l.b16 %v1487
        %v1616 = vunpack.c.l.b16 %v1488
        %v1617 = vunpack.c.l.b16 %v1489
        %v1618 = vunpack.c.l.b16 %v1490
        %v1619 = vunpack.c.l.b16 %v1491
        %v1620 = vunpack.c.l.b16 %v1492
        %v1621 = vunpack.c.l.b16 %v1493
        %v1622 = vunpack.c.l.b16 %v1494
        %v1623 = vunpack.c.l.b16 %v1495
        %v1624 = vpack.c.b16 %v1561, %v1560
        %v1625 = vpack.c.b16 %v1563, %v1562
        %v1626 = vpack.c.b16 %v1565, %v1564
        %v1627 = vpack.c.b16 %v1567, %v1566
        %v1628 = vpack.c.b16 %v1569, %v1568
        %v1629 = vpack.c.b16 %v1571, %v1570
        %v1630 = vpack.c.b16 %v1573, %v1572
        %v1631 = vpack.c.b16 %v1575, %v1574
        %v1632 = vpack.c.b16 %v1577, %v1576
        %v1633 = vpack.c.b16 %v1579, %v1578
        %v1634 = vpack.c.b16 %v1581, %v1580
        %v1635 = vpack.c.b16 %v1583, %v1582
        %v1636 = vpack.c.b16 %v1585, %v1584
        %v1637 = vpack.c.b16 %v1587, %v1586
        %v1638 = vpack.c.b16 %v1589, %v1588
        %v1639 = vpack.c.b16 %v1591, %v1590
        %v1640 = vpack.c.b16 %v1593, %v1592
        %v1641 = vpack.c.b16 %v1595, %v1594
        %v1642 = vpack.c.b16 %v1597, %v1596
        %v1643 = vpack.c.b16 %v1599, %v1598
        %v1644 = vpack.c.b16 %v1601, %v1600
        %v1645 = vpack.c.b16 %v1603, %v1602
        %v1646 = vpack.c.b16 %v1605, %v1604
        %v1647 = vpack.c.b16 %v1607, %v1606
        %v1648 = vpack.c.b16 %v1609, %v1608
        %v1649 = vpack.c.b16 %v1611, %v1610
        %v1650 = vpack.c.b16 %v1613, %v1612
        %v1651 = vpack.c.b16 %v1615, %v1614
        %v1652 = vpack.c.b16 %v1617, %v1616
        %v1653 = vpack.c.b16 %v1619, %v1618
        %v1654 = vpack.c.b16 %v1621, %v1620
        %v1655 = vpack.c.b16 %v1623, %v1622
        %1688 = vmatprep.subr.bf16.mxu0 0
        %1689 = vmatpush1.bf16.msra.mxu0 %v1624
        %1690 = vmatprep.subr.bf16.mxu0 0
        %1691 = vmatpush1.bf16.msra.mxu0 %v1625
        %1692 = vmatprep.subr.bf16.mxu0 0
        %1693 = vmatpush1.bf16.msra.mxu0 %v1626
        %1694 = vmatprep.subr.bf16.mxu0 0
        %1695 = vmatpush1.bf16.msra.mxu0 %v1627
        %1696 = vmatprep.subr.bf16.mxu0 0
        %1697 = vmatpush1.bf16.msra.mxu0 %v1628
        %1698 = vmatprep.subr.bf16.mxu0 0
        %1699 = vmatpush1.bf16.msra.mxu0 %v1629
        %1700 = vmatprep.subr.bf16.mxu0 0
        %1701 = vmatpush1.bf16.msra.mxu0 %v1630
        %1702 = vmatprep.subr.bf16.mxu0 0
        %1703 = vmatpush1.bf16.msra.mxu0 %v1631
        %1704 = vmatprep.subr.bf16.mxu0 0
        %1705 = vmatpush1.bf16.msra.mxu0 %v1632
        %1706 = vmatprep.subr.bf16.mxu0 0
        %1707 = vmatpush1.bf16.msra.mxu0 %v1633
        %1708 = vmatprep.subr.bf16.mxu0 0
        %1709 = vmatpush1.bf16.msra.mxu0 %v1634
        %1710 = vmatprep.subr.bf16.mxu0 0
        %1711 = vmatpush1.bf16.msra.mxu0 %v1635
        %1712 = vmatprep.subr.bf16.mxu0 0
        %1713 = vmatpush1.bf16.msra.mxu0 %v1636
        %1714 = vmatprep.subr.bf16.mxu0 0
        %1715 = vmatpush1.bf16.msra.mxu0 %v1637
        %1716 = vmatprep.subr.bf16.mxu0 0
        %1717 = vmatpush1.bf16.msra.mxu0 %v1638
        %1718 = vmatprep.subr.bf16.mxu0 0
        %1719 = vmatpush1.bf16.msra.mxu0 %v1639
        %1720 = vmatprep.mubr.bf16.mxu0 %v1401
        %1721 = vmatmul.mubr.bf16.gmra.mrb[0].mxu0 %v1400
        %v1722 = vpop.f32.mrb[0].mxu0
        %v1723 = vadd.f32 0.0, %v1722
        %v1724 = vpop.f32.mrb[0].mxu0
        %v1725 = vpop.f32.mrb[0].mxu0
        %v1726 = vadd.f32 0.0, %v1725
        %v1727 = vpop.f32.mrb[0].mxu0
        %1728 = vmatprep.mubr.bf16.mxu0 %v1405
        %1729 = vmatmul.mubr.bf16.gmra.mrb[0].mxu0 %v1404
        %v1730 = vpop.f32.mrb[0].mxu0
        %v1731 = vadd.f32 0.0, %v1730
        %v1732 = vpop.f32.mrb[0].mxu0
        %v1733 = vpop.f32.mrb[0].mxu0
        %v1734 = vadd.f32 0.0, %v1733
        %v1735 = vpop.f32.mrb[0].mxu0
        %1736 = vmatprep.mubr.bf16.mxu0 %v1409
        %1737 = vmatmul.mubr.bf16.gmra.mrb[0].mxu0 %v1408
        %v1738 = vpop.f32.mrb[0].mxu0
        %v1739 = vadd.f32 0.0, %v1738
        %v1740 = vpop.f32.mrb[0].mxu0
        %v1741 = vpop.f32.mrb[0].mxu0
        %v1742 = vadd.f32 0.0, %v1741
        %v1743 = vpop.f32.mrb[0].mxu0
        %1744 = vmatprep.mubr.bf16.mxu0 %v1413
        %1745 = vmatmul.mubr.bf16.gmra.mrb[0].mxu0 %v1412
        %v1746 = vpop.f32.mrb[0].mxu0
        %v1747 = vadd.f32 0.0, %v1746
        %v1748 = vpop.f32.mrb[0].mxu0
        %v1749 = vpop.f32.mrb[0].mxu0
        %v1750 = vadd.f32 0.0, %v1749
        %v1751 = vpop.f32.mrb[0].mxu0
        %1752 = vmatprep.mubr.bf16.mxu0 %v1417
        %1753 = vmatmul.mubr.bf16.gmra.mrb[0].mxu0 %v1416
        %v1754 = vpop.f32.mrb[0].mxu0
        %v1755 = vadd.f32 0.0, %v1754
        %v1756 = vpop.f32.mrb[0].mxu0
        %v1757 = vpop.f32.mrb[0].mxu0
        %v1758 = vadd.f32 0.0, %v1757
        %v1759 = vpop.f32.mrb[0].mxu0
        %1760 = vmatprep.mubr.bf16.mxu0 %v1421
        %1761 = vmatmul.mubr.bf16.gmra.mrb[0].mxu0 %v1420
        %v1762 = vpop.f32.mrb[0].mxu0
        %v1763 = vadd.f32 0.0, %v1762
        %v1764 = vpop.f32.mrb[0].mxu0
        %v1765 = vpop.f32.mrb[0].mxu0
        %v1766 = vadd.f32 0.0, %v1765
        %v1767 = vpop.f32.mrb[0].mxu0
        %1768 = vmatprep.mubr.bf16.mxu0 %v1425
        %1769 = vmatmul.mubr.bf16.gmra.mrb[0].mxu0 %v1424
        %v1770 = vpop.f32.mrb[0].mxu0
        %v1771 = vadd.f32 0.0, %v1770
        %v1772 = vpop.f32.mrb[0].mxu0
        %v1773 = vpop.f32.mrb[0].mxu0
        %v1774 = vadd.f32 0.0, %v1773
        %v1775 = vpop.f32.mrb[0].mxu0
        %1776 = vmatprep.mubr.bf16.mxu0 %v1429
        %1777 = vmatmul.mubr.bf16.gmra.mrb[0].mxu0 %v1428
        %v1778 = vpop.f32.mrb[0].mxu0
        %v1779 = vadd.f32 0.0, %v1778
        %v1780 = vpop.f32.mrb[0].mxu0
        %v1781 = vpop.f32.mrb[0].mxu0
        %v1782 = vadd.f32 0.0, %v1781
        %v1783 = vpop.f32.mrb[0].mxu0
        %1784 = vdwg.mxu0
        %1785 = vmatprep.subr.bf16.mxu0 0
        %1786 = vmatpush1.bf16.msra.mxu0 %v1640
        %1787 = vmatprep.subr.bf16.mxu0 0
        %1788 = vmatpush1.bf16.msra.mxu0 %v1641
        %1789 = vmatprep.subr.bf16.mxu0 0
        %1790 = vmatpush1.bf16.msra.mxu0 %v1642
        %1791 = vmatprep.subr.bf16.mxu0 0
        %1792 = vmatpush1.bf16.msra.mxu0 %v1643
        %1793 = vmatprep.subr.bf16.mxu0 0
        %1794 = vmatpush1.bf16.msra.mxu0 %v1644
        %1795 = vmatprep.subr.bf16.mxu0 0
        %1796 = vmatpush1.bf16.msra.mxu0 %v1645
        %1797 = vmatprep.subr.bf16.mxu0 0
        %1798 = vmatpush1.bf16.msra.mxu0 %v1646
        %1799 = vmatprep.subr.bf16.mxu0 0
        %1800 = vmatpush1.bf16.msra.mxu0 %v1647
        %1801 = vmatprep.subr.bf16.mxu0 0
        %1802 = vmatpush1.bf16.msra.mxu0 %v1648
        %1803 = vmatprep.subr.bf16.mxu0 0
        %1804 = vmatpush1.bf16.msra.mxu0 %v1649
        %1805 = vmatprep.subr.bf16.mxu0 0
        %1806 = vmatpush1.bf16.msra.mxu0 %v1650
        %1807 = vmatprep.subr.bf16.mxu0 0
        %1808 = vmatpush1.bf16.msra.mxu0 %v1651
        %1809 = vmatprep.subr.bf16.mxu0 0
        %1810 = vmatpush1.bf16.msra.mxu0 %v1652
        %1811 = vmatprep.subr.bf16.mxu0 0
        %1812 = vmatpush1.bf16.msra.mxu0 %v1653
        %1813 = vmatprep.subr.bf16.mxu0 0
        %1814 = vmatpush1.bf16.msra.mxu0 %v1654
        %1815 = vmatprep.subr.bf16.mxu0 0
        %1816 = vmatpush1.bf16.msra.mxu0 %v1655
        %1817 = vmatprep.mubr.bf16.mxu0 %v1403
        %1818 = vmatmul.mubr.bf16.gmra.mrb[0].mxu0 %v1402
        %v1819 = vpop.f32.mrb[0].mxu0
        %v1820 = vadd.f32 %v1723, %v1819
        %v1821 = vpop.f32.mrb[0].mxu0
        %v1822 = vpop.f32.mrb[0].mxu0
        %v1823 = vadd.f32 %v1726, %v1822
        %v1824 = vpop.f32.mrb[0].mxu0
        %1825 = vmatprep.mubr.bf16.mxu0 %v1407
        %1826 = vmatmul.mubr.bf16.gmra.mrb[0].mxu0 %v1406
        %v1827 = vpop.f32.mrb[0].mxu0
        %v1828 = vadd.f32 %v1731, %v1827
        %v1829 = vpop.f32.mrb[0].mxu0
        %v1830 = vpop.f32.mrb[0].mxu0
        %v1831 = vadd.f32 %v1734, %v1830
        %v1832 = vpop.f32.mrb[0].mxu0
        %1833 = vmatprep.mubr.bf16.mxu0 %v1411
        %1834 = vmatmul.mubr.bf16.gmra.mrb[0].mxu0 %v1410
        %v1835 = vpop.f32.mrb[0].mxu0
        %v1836 = vadd.f32 %v1739, %v1835
        %v1837 = vpop.f32.mrb[0].mxu0
        %v1838 = vpop.f32.mrb[0].mxu0
        %v1839 = vadd.f32 %v1742, %v1838
        %v1840 = vpop.f32.mrb[0].mxu0
        %1841 = vmatprep.mubr.bf16.mxu0 %v1415
        %1842 = vmatmul.mubr.bf16.gmra.mrb[0].mxu0 %v1414
        %v1843 = vpop.f32.mrb[0].mxu0
        %v1844 = vadd.f32 %v1747, %v1843
        %v1845 = vpop.f32.mrb[0].mxu0
        %v1846 = vpop.f32.mrb[0].mxu0
        %v1847 = vadd.f32 %v1750, %v1846
        %v1848 = vpop.f32.mrb[0].mxu0
        %1849 = vmatprep.mubr.bf16.mxu0 %v1419
        %1850 = vmatmul.mubr.bf16.gmra.mrb[0].mxu0 %v1418
        %v1851 = vpop.f32.mrb[0].mxu0
        %v1852 = vadd.f32 %v1755, %v1851
        %v1853 = vpop.f32.mrb[0].mxu0
        %v1854 = vpop.f32.mrb[0].mxu0
        %v1855 = vadd.f32 %v1758, %v1854
        %v1856 = vpop.f32.mrb[0].mxu0
        %1857 = vmatprep.mubr.bf16.mxu0 %v1423
        %1858 = vmatmul.mubr.bf16.gmra.mrb[0].mxu0 %v1422
        %v1859 = vpop.f32.mrb[0].mxu0
        %v1860 = vadd.f32 %v1763, %v1859
        %v1861 = vpop.f32.mrb[0].mxu0
        %v1862 = vpop.f32.mrb[0].mxu0
        %v1863 = vadd.f32 %v1766, %v1862
        %v1864 = vpop.f32.mrb[0].mxu0
        %1865 = vmatprep.mubr.bf16.mxu0 %v1427
        %1866 = vmatmul.mubr.bf16.gmra.mrb[0].mxu0 %v1426
        %v1867 = vpop.f32.mrb[0].mxu0
        %v1868 = vadd.f32 %v1771, %v1867
        %v1869 = vpop.f32.mrb[0].mxu0
        %v1870 = vpop.f32.mrb[0].mxu0
        %v1871 = vadd.f32 %v1774, %v1870
        %v1872 = vpop.f32.mrb[0].mxu0
        %1873 = vmatprep.mubr.bf16.mxu0 %v1431
        %1874 = vmatmul.mubr.bf16.gmra.mrb[0].mxu0 %v1430
        %v1875 = vpop.f32.mrb[0].mxu0
        %v1876 = vadd.f32 %v1779, %v1875
        %v1877 = vpop.f32.mrb[0].mxu0
        %v1878 = vpop.f32.mrb[0].mxu0
        %v1879 = vadd.f32 %v1782, %v1878
        %v1880 = vpop.f32.mrb[0].mxu0
        %1881 = vdwg.mxu0
        %v1882 = vadd.f32 %v1384, %v1820
        %v1883 = vadd.f32 %v1385, %v1823
        %v1884 = vadd.f32 %v1386, %v1828
        %v1885 = vadd.f32 %v1387, %v1831
        %v1886 = vadd.f32 %v1388, %v1836
        %v1887 = vadd.f32 %v1389, %v1839
        %v1888 = vadd.f32 %v1390, %v1844
        %v1889 = vadd.f32 %v1391, %v1847
        %v1890 = vadd.f32 %v1392, %v1852
        %v1891 = vadd.f32 %v1393, %v1855
        %v1892 = vadd.f32 %v1394, %v1860
        %v1893 = vadd.f32 %v1395, %v1863
        %v1894 = vadd.f32 %v1396, %v1868
        %v1895 = vadd.f32 %v1397, %v1871
        %v1896 = vadd.f32 %v1398, %v1876
        %v1897 = vadd.f32 %v1399, %v1879
        %1898 = vst [vmem:[#allocation2] sm:$0xff] %v1882
        %1899 = vst [vmem:[#allocation2 + $0x8] sm:$0xff] %v1883
        %1900 = vst [vmem:[#allocation2 + $0x10] sm:$0xff] %v1884
        %1901 = vst [vmem:[#allocation2 + $0x18] sm:$0xff] %v1885
        %1902 = vst [vmem:[#allocation2 + $0x20] sm:$0xff] %v1886
        %1903 = vst [vmem:[#allocation2 + $0x28] sm:$0xff] %v1887
        %1904 = vst [vmem:[#allocation2 + $0x30] sm:$0xff] %v1888
        %1905 = vst [vmem:[#allocation2 + $0x38] sm:$0xff] %v1889
        %1906 = vst [vmem:[#allocation2 + $0x40] sm:$0xff] %v1890
        %1907 = vst [vmem:[#allocation2 + $0x48] sm:$0xff] %v1891
        %1908 = vst [vmem:[#allocation2 + $0x50] sm:$0xff] %v1892
        %1909 = vst [vmem:[#allocation2 + $0x58] sm:$0xff] %v1893
        %1910 = vst [vmem:[#allocation2 + $0x60] sm:$0xff] %v1894
        %1911 = vst [vmem:[#allocation2 + $0x68] sm:$0xff] %v1895
        %1912 = vst [vmem:[#allocation2 + $0x70] sm:$0xff] %v1896
        %1913 = vst [vmem:[#allocation2 + $0x78] sm:$0xff] %v1897
        // Predicated region
        $region57: #{tpu_custom_call.1} parent=39 // pred_check
          %p1914 = pneg %p324
        $region58: #{tpu_custom_call.1} parent=39 // pred_check_branch
          %1916 = sbr.rel (%p1914) target = $region60
        $region59: #{tpu_custom_call.1} parent=39 // pred_region
          %v1917 = vld [vmem:[#allocation2] sm:$0xff]
          %v1918 = vld [vmem:[#allocation2 + $0x8] sm:$0xff]
          %v1919 = vld [vmem:[#allocation2 + $0x10] sm:$0xff]
          %v1920 = vld [vmem:[#allocation2 + $0x18] sm:$0xff]
          %v1921 = vld [vmem:[#allocation2 + $0x20] sm:$0xff]
          %v1922 = vld [vmem:[#allocation2 + $0x28] sm:$0xff]
          %v1923 = vld [vmem:[#allocation2 + $0x30] sm:$0xff]
          %v1924 = vld [vmem:[#allocation2 + $0x38] sm:$0xff]
          %v1925 = vld [vmem:[#allocation2 + $0x40] sm:$0xff]
          %v1926 = vld [vmem:[#allocation2 + $0x48] sm:$0xff]
          %v1927 = vld [vmem:[#allocation2 + $0x50] sm:$0xff]
          %v1928 = vld [vmem:[#allocation2 + $0x58] sm:$0xff]
          %v1929 = vld [vmem:[#allocation2 + $0x60] sm:$0xff]
          %v1930 = vld [vmem:[#allocation2 + $0x68] sm:$0xff]
          %v1931 = vld [vmem:[#allocation2 + $0x70] sm:$0xff]
          %v1932 = vld [vmem:[#allocation2 + $0x78] sm:$0xff]
          %v1933 = vld [vmem:[%s4] sm:$0x1]
          %v1935 = vlaneseq
          %v1936 = vshrl.u32 %v1935, 7
          %v1937 = vsub.s32 0, %v1936
          %v1938 = vrot.slane %v1933, %v1937
          %v1940 = vadd.f32 %v1917, %v1938
          %v1941 = vadd.f32 %v1918, %v1938
          %v1942 = vadd.f32 %v1919, %v1938
          %v1943 = vadd.f32 %v1920, %v1938
          %v1944 = vadd.f32 %v1921, %v1938
          %v1945 = vadd.f32 %v1922, %v1938
          %v1946 = vadd.f32 %v1923, %v1938
          %v1947 = vadd.f32 %v1924, %v1938
          %v1948 = vadd.f32 %v1925, %v1938
          %v1949 = vadd.f32 %v1926, %v1938
          %v1950 = vadd.f32 %v1927, %v1938
          %v1951 = vadd.f32 %v1928, %v1938
          %v1952 = vadd.f32 %v1929, %v1938
          %v1953 = vadd.f32 %v1930, %v1938
          %v1954 = vadd.f32 %v1931, %v1938
          %v1955 = vadd.f32 %v1932, %v1938
          %v1956 = vadd.f32 %v1940, %v344
          %v1957 = vadd.f32 %v1941, %v345
          %v1958 = vadd.f32 %v1942, %v346
          %v1959 = vadd.f32 %v1943, %v347
          %v1960 = vadd.f32 %v1944, %v348
          %v1961 = vadd.f32 %v1945, %v349
          %v1962 = vadd.f32 %v1946, %v350
          %v1963 = vadd.f32 %v1947, %v351
          %v1964 = vadd.f32 %v1948, %v352
          %v1965 = vadd.f32 %v1949, %v353
          %v1966 = vadd.f32 %v1950, %v354
          %v1967 = vadd.f32 %v1951, %v355
          %v1968 = vadd.f32 %v1952, %v356
          %v1969 = vadd.f32 %v1953, %v357
          %v1970 = vadd.f32 %v1954, %v358
          %v1971 = vadd.f32 %v1955, %v359
          %1972 = vst [vmem:[%s313] sm:$0xff] %v1956
          %1973 = vst [vmem:[%s313 + $0x8] sm:$0xff] %v1957
          %1974 = vst [vmem:[%s313 + $0x10] sm:$0xff] %v1958
          %1975 = vst [vmem:[%s313 + $0x18] sm:$0xff] %v1959
          %1976 = vst [vmem:[%s313 + $0x20] sm:$0xff] %v1960
          %1977 = vst [vmem:[%s313 + $0x28] sm:$0xff] %v1961
          %1978 = vst [vmem:[%s313 + $0x30] sm:$0xff] %v1962
          %1979 = vst [vmem:[%s313 + $0x38] sm:$0xff] %v1963
          %1980 = vst [vmem:[%s313 + $0x40] sm:$0xff] %v1964
          %1981 = vst [vmem:[%s313 + $0x48] sm:$0xff] %v1965
          %1982 = vst [vmem:[%s313 + $0x50] sm:$0xff] %v1966
          %1983 = vst [vmem:[%s313 + $0x58] sm:$0xff] %v1967
          %1984 = vst [vmem:[%s313 + $0x60] sm:$0xff] %v1968
          %1985 = vst [vmem:[%s313 + $0x68] sm:$0xff] %v1969
          %1986 = vst [vmem:[%s313 + $0x70] sm:$0xff] %v1970
          %1987 = vst [vmem:[%s313 + $0x78] sm:$0xff] %v1971
        $region60: #{tpu_custom_call.1} parent=39 // pred_fallthru
          _
        %s1988 = sand.u32 %s168, 1
        %s1989 = scalar_lea.sflag [#allocation5], %s1988
        %s1990 = sand.u32 %s168, 1
        %s1991 = smul.addr %s1990, 128
        %s1992 = scalar_lea.vmem [#allocation9], %s1991
        // Predicated region
        $region61: #{tpu_custom_call.1} parent=39 // pred_check
          %p1993 = pneg %p178
        $region62: #{tpu_custom_call.1} parent=39 // pred_check_branch
          %1995 = sbr.rel (%p1993) target = $region64
        $region63: #{tpu_custom_call.1} parent=39 // pred_region
          %s1996 = smul.u32 16, %s27
          %s1998 = ssub.s32 2048, 2048
          %1999 = vsyncadd %s1989, %s1998
          %s2000 = smul.addr %s1996, 128
          %s2001 = scalar_lea.hbm %s5, %s2000
          %s2002 = sshll.u32 %s1992, 4
          %s2003 = int_to_ptr.vmem [resolvable:$true] %s2002
          %2008 = dma.vmem_to_hbm [thread:$0]  %s2003, 2048, %s2001, %s1989, 128, 128, 8
        $region64: #{tpu_custom_call.1} parent=39 // pred_fallthru
          _
      $region40: #{tpu_custom_call.1} parent=5 // pred_fallthru
        _
      %p2009 = scmp.le.s32.totalorder 2, %s18
      // Predicated region
      $region65: #{tpu_custom_call.1} parent=5 // pred_check
        %p2010 = pneg %p2009
      $region66: #{tpu_custom_call.1} parent=5 // pred_check_branch
        %2012 = sbr.rel (%p2010) target = $region68
      $region67: #{tpu_custom_call.1} parent=5 // pred_region
        %s2013 = ssub.s32 %s18, 2
        // Predicated region
        $region69: #{tpu_custom_call.1} parent=67 // pred_check
          %p2014 = pneg %p184
        $region70: #{tpu_custom_call.1} parent=67 // pred_check_branch
          %2016 = sbr.rel (%p2014) target = $region72
        $region71: #{tpu_custom_call.1} parent=67 // pred_region
          %s2017 = sand.u32 %s169, 1
          %s2018 = scalar_lea.sflag [#allocation5], %s2017
          %s2019 = sand.u32 %s169, 1
          %s2020 = smul.addr %s2019, 128
          %s2021 = scalar_lea.vmem [#allocation9], %s2020
          %2022 = dma.done %s2018, 2048
        $region72: #{tpu_custom_call.1} parent=67 // pred_fallthru
          _
      $region68: #{tpu_custom_call.1} parent=5 // pred_fallthru
        _
    $region6: #{tpu_custom_call.1} parent=1 // loop_footer
      %s22 = sadd.s32 1, %s18
    $region7: #{tpu_custom_call.1} parent=1 // loop_footer_branch
      %17 = sbr.rel target = $region3
    $region8: #{tpu_custom_call.1} parent=1 // loop_exit
      _
    %2023 = vsyncpa [#allocation4], 1
    %s2024 = scalar_lea.sflag [#allocation4], 1
    %2025 = vsyncpa %s2024, 1
    %2026 = vsyncpa [#allocation7], 1
    %2027 = vsyncpa [#allocation5], 1
    %s2028 = scalar_lea.sflag [#allocation5], 1
    %2029 = vsyncpa %s2028, 1

</llo_original>
